<compile_context>
chip_gen: v7x
topology: tpu7x:2x2x1
jax: 0.10.0
libtpu: 0.0.40
codegen_flags: <defaults>
</compile_context>

<pallas_src>
import functools
import math

import jax
import jax.numpy as jnp
from jax.experimental import pallas as pl
from jax.experimental.pallas import tpu as pltpu


_LANE = 128
# Per-channel accumulator rows (each a (1, 128) lane row, lane-summed on the host):
#   0: tp    = sum_s [y==c] * p_c
#   1: sum_p = sum_s p_c                  (fp = sum_p - tp)
#   2: sum_y = sum_s [y==c]               (fn = sum_y - tp)
#   3: s0    = sum_s thr(x_c)             (RG mass)
#   4: sy    = sum_s thr(x_c) * (h/H)
#   5: sx    = sum_s thr(x_c) * (w/W)
#   6: sz    = sum_s thr(x_c) * (d/D)
# plus one extra row: CE partial = sum_s (m + logsumexp) - sum_{c,s} [y==c] * x_c
_N_CH_STATS = 7


def _stats_kernel(logits_ref, packed_ref, stats_ref, acc_ref, *, C, inv_h, inv_w, inv_d):
    s = pl.program_id(2)
    n_s = pl.num_programs(2)

    @pl.when(s == 0)
    def _init():
        acc_ref[...] = jnp.zeros_like(acc_ref)

    packed = packed_ref[0]                                       # (R_TILE, 128) int32
    lab = packed >> 27                                           # label bits (sign bit unused)
    cy = ((packed >> 18) & 511).astype(jnp.float32) * inv_h
    cx = ((packed >> 9) & 511).astype(jnp.float32) * inv_w
    cz = (packed & 511).astype(jnp.float32) * inv_d

    # Dense (R_TILE, 128) channel planes; softmax over channels is C-1 elementwise ops.
    planes = [logits_ref[0, c].astype(jnp.float32) for c in range(C)]
    m = planes[0]
    for c in range(1, C):
        m = jnp.maximum(m, planes[c])
    es = [jnp.exp(planes[c] - m) for c in range(C)]
    sum_e = es[0]
    for c in range(1, C):
        sum_e = sum_e + es[c]
    inv_sum = pl.reciprocal(sum_e)                               # EUP, full precision

    # CE lane row: sum over sublanes of (m + logsumexp); the -y*x terms are folded in below.
    ce_rows = jnp.sum(m + jnp.log(sum_e), axis=0, keepdims=True)

    for c in range(C):
        xm = planes[c]
        pc = es[c] * inv_sum
        ymask = lab == c
        thr = jnp.where(xm > 0.5, xm, 0.0)                       # nn.Threshold(0.5, 0) on raw logits
        base = c * _N_CH_STATS
        acc_ref[base + 0:base + 1, :] += jnp.sum(jnp.where(ymask, pc, 0.0), axis=0, keepdims=True)
        acc_ref[base + 1:base + 2, :] += jnp.sum(pc, axis=0, keepdims=True)
        acc_ref[base + 2:base + 3, :] += jnp.sum(jnp.where(ymask, 1.0, 0.0), axis=0, keepdims=True)
        acc_ref[base + 3:base + 4, :] += jnp.sum(thr, axis=0, keepdims=True)
        acc_ref[base + 4:base + 5, :] += jnp.sum(thr * cy, axis=0, keepdims=True)
        acc_ref[base + 5:base + 6, :] += jnp.sum(thr * cx, axis=0, keepdims=True)
        acc_ref[base + 6:base + 7, :] += jnp.sum(thr * cz, axis=0, keepdims=True)
        ce_rows = ce_rows - jnp.sum(jnp.where(ymask, xm, 0.0), axis=0, keepdims=True)

    acc_ref[C * _N_CH_STATS:C * _N_CH_STATS + 1, :] += ce_rows

    @pl.when(s == n_s - 1)
    def _store():
        stats_ref[0, 0, :, :] = acc_ref[:, :]


def _generation_budget():
    """(per-input-buffer tile target bytes, vmem_limit cap bytes), keyed off physical VMEM."""
    try:
        cap = int(pltpu.get_tpu_info().vmem_capacity_bytes)
    except Exception:
        cap = 128 * 2 ** 20
    if cap <= 96 * 2 ** 20:                      # v7x-class: 64 MiB VMEM per TensorCore
        return 4 * 2 ** 20, 48 * 2 ** 20
    return 12 * 2 ** 20, 100 * 2 ** 20           # v5e / v6e: 128 MiB VMEM


def _choose_r_tile(rows_needed, C, itemsize, target_bytes):
    """Sublane rows per tile: multiple of 8, sized to the per-buffer byte target."""
    per_row = _LANE * (C * itemsize + 4)         # logits row + packed-word row
    r = max(8, (int(target_bytes) // per_row) // 8 * 8)
    r_need = ((rows_needed + 7) // 8) * 8
    return min(r, r_need)


def _loss_stats(logits, packed, C, H, W, D, n_split, r_tile, n_s, vmem_limit):
    B = logits.shape[0]
    nrows = C * _N_CH_STATS + 1
    kernel = functools.partial(_stats_kernel, C=C,
                               inv_h=1.0 / H, inv_w=1.0 / W, inv_d=1.0 / D)
    grid_spec = pltpu.PrefetchScalarGridSpec(
        num_scalar_prefetch=0,
        grid=(n_split, B, n_s),
        in_specs=[
            pl.BlockSpec((1, C, r_tile, _LANE), lambda g, b, s: (b, 0, g * n_s + s, 0)),
            pl.BlockSpec((1, r_tile, _LANE), lambda g, b, s: (b, g * n_s + s, 0)),
        ],
        out_specs=pl.BlockSpec((1, 1, nrows, _LANE), lambda g, b, s: (g, b, 0, 0)),
        scratch_shapes=[pltpu.VMEM((nrows, _LANE), jnp.float32)],
    )
    return pl.pallas_call(
        kernel,
        out_shape=jax.ShapeDtypeStruct((n_split, B, nrows, _LANE), jnp.float32),
        grid_spec=grid_spec,
        compiler_params=pltpu.CompilerParams(
            dimension_semantics=("parallel", "parallel", "arbitrary"),
            vmem_limit_bytes=vmem_limit,
        ),
    )(logits, packed)


def dc_and_ce_and_rg_loss(net_output, target, relations,
                          weight_ce=1.0, weight_dice=1.0, weight_rg=1.0,
                          smooth=1e-5, do_bg=False, log_dice=False, n_split=2):
    """Forward pass of DC_and_CE_and_RG_loss (ignore_label=None, aggregate='sum',
    square_dice=False, batch_dice=True).

    net_output: (B, C, H, W, D) logits — pass bf16 on any generation (v5e included; the kernel
    upcasts to f32 before compute) to halve the dominant HBM stream.
    target: (B, 1, H, W, D) integer labels.
    n_split: spatial shards on the leading 'parallel' grid axis; 2 keeps both v7x TensorCores
    busy even at B=1 and is harmless on single-core parts.
    """
    B, C, H, W, D = net_output.shape
    S = H * W * D
    assert C <= 15, "packed label+coordinate word supports at most 15 classes"
    assert max(H, W, D) <= 512, "packed coordinate encoding supports spatial dims up to 512"

    target_bytes, vmem_cap = _generation_budget()
    itemsize = jnp.dtype(net_output.dtype).itemsize

    rows = -(-S // _LANE)
    rows_needed = -(-rows // n_split)
    r_tile = _choose_r_tile(rows_needed, C, itemsize, target_bytes)
    rows_per_split = -(-rows_needed // r_tile) * r_tile
    rows_total = rows_per_split * n_split
    n_s = rows_per_split // r_tile
    s_pad = rows_total * _LANE
    n_pad = s_pad - S

    block_bytes = r_tile * _LANE * (C * itemsize + 4)
    vmem_limit = int(min(vmem_cap, max(32 * 2 ** 20, 2 * block_bytes + 24 * 2 ** 20)))

    # Logits stream: keep caller dtype, zero-pad the flattened spatial axis, (rows, 128) layout.
    logits = net_output.reshape(B, C, S)
    if n_pad:
        logits = jnp.pad(logits, ((0, 0), (0, 0), (0, n_pad)))
    logits = logits.reshape(B, C, rows_total, _LANE)

    # Single packed aux stream: (label<<27)|(h<<18)|(w<<9)|d; padded voxels get the sentinel label C.
    hh = jnp.arange(H, dtype=jnp.int32).reshape(H, 1, 1)
    ww = jnp.arange(W, dtype=jnp.int32).reshape(1, W, 1)
    dd = jnp.arange(D, dtype=jnp.int32).reshape(1, 1, D)
    coord_word = ((hh << 18) | (ww << 9) | dd).reshape(1, S)
    labels = target.reshape(B, S).astype(jnp.int32)
    packed = (labels << 27) | coord_word
    if n_pad:
        packed = jnp.pad(packed, ((0, 0), (0, n_pad)), constant_values=C << 27)
    packed = packed.reshape(B, rows_total, _LANE)

    stats4 = _loss_stats(logits, packed, C, H, W, D, n_split, r_tile, n_s, vmem_limit)
    stats = jnp.sum(stats4, axis=(0, 3))                       # (B, C*7 + 1): sum splits + lanes

    ch = stats[:, :C * _N_CH_STATS].reshape(B, C, _N_CH_STATS)
    tp_b = ch[:, :, 0]
    sum_p_b = ch[:, :, 1] - n_pad / C                          # padded voxels contribute 1/C each
    sum_y_b = ch[:, :, 2]
    s0 = ch[:, :, 3]
    sy = ch[:, :, 4]
    sx = ch[:, :, 5]
    sz = ch[:, :, 6]
    ce_b = stats[:, C * _N_CH_STATS] - n_pad * math.log(C)     # padded voxels: lse=log(C), y*x=0

    # ---- SoftDiceLoss(apply_nonlin=softmax, batch_dice=True, smooth=1e-5, do_bg=False) ----
    tp = jnp.sum(tp_b, axis=0)
    fp = jnp.sum(sum_p_b - tp_b, axis=0)
    fn = jnp.sum(sum_y_b - tp_b, axis=0)
    nominator = 2.0 * tp + smooth
    denominator = 2.0 * tp + fp + fn + smooth
    dc = nominator / (denominator + 1e-8)
    if not do_bg:
        dc = dc[1:]
    dc_loss = -jnp.mean(dc)
    if log_dice:
        dc_loss = -jnp.log(-dc_loss)

    # ---- RobustCrossEntropyLoss (mean over all B*S voxels) ----
    ce_loss = jnp.sum(ce_b) / (B * S)

    # ---- GraphSpatialLoss3D ----
    cent_y = sy / s0
    cent_x = sx / s0
    cent_z = sz / s0
    rg_loss = jnp.float32(0.0)
    for (i, j, dy_gt, dx_gt, dz_gt) in relations:
        for cent, gt in ((cent_y, dy_gt), (cent_x, dx_gt), (cent_z, dz_gt)):
            d = jnp.nan_to_num(cent[:, i] - cent[:, j] - gt, nan=0.0, posinf=0.0, neginf=0.0)
            rg_loss = rg_loss + jnp.mean(jnp.square(d))

    return weight_ce * ce_loss + weight_dice * dc_loss + weight_rg * rg_loss


if __name__ == "__main__":
    key = jax.random.PRNGKey(0)
    k1, k2 = jax.random.split(key)

    B, C, H, W, D = 2, 4, 8, 8, 8                # small 3D segmentation-style shapes
    net_output = jax.random.normal(k1, (B, C, H, W, D), dtype=jnp.float32)
    target = jax.random.randint(k2, (B, 1, H, W, D), 0, C, dtype=jnp.int32)

    # rg_kwargs["relations"]: (source_class, target_class, dy_gt, dx_gt, dz_gt)
    relations = [(1, 2, 0.1, 0.0, 0.0), (2, 3, 0.0, -0.05, 0.1)]

    loss = dc_and_ce_and_rg_loss(net_output, target, relations)
    jax.block_until_ready(loss)
    print("KERNEL_OK")
</pallas_src>

<mosaic_0001>
module attributes {stable_mosaic.version = 11 : i64} {
  func.func @_stats_kernel(%arg0: i32, %arg1: i32, %arg2: i32, %arg3: memref<1x4x8x128xf32, #tpu.memory_space<vmem>>, %arg4: memref<1x8x128xi32, #tpu.memory_space<vmem>>, %arg5: memref<1x1x29x128xf32, #tpu.memory_space<vmem>>, %arg6: memref<29x128xf32, #tpu.memory_space<vmem>>) attributes {dimension_semantics = [#tpu.dimension_semantics<parallel>, #tpu.dimension_semantics<parallel>, #tpu.dimension_semantics<arbitrary>], iteration_bounds = array<i64: 2, 2, 1>, scalar_prefetch = 0 : i64, scratch_operands = 1 : i64, tpu.core_type = #tpu.core_type<tc>, window_params = [{transform_indices = @transform_0, window_bounds = array<i64: 1, 4, 8, 128>}, {transform_indices = @transform_1, window_bounds = array<i64: 1, 8, 128>}, {transform_indices = @transform_2, window_bounds = array<i64: 1, 1, 29, 128>}]} {
    %c0_i32 = arith.constant 0 : i32
    %0 = arith.cmpi eq, %arg2, %c0_i32 : i32
    %1 = arith.extui %0 : i1 to i32
    %c0_i32_0 = arith.constant 0 : i32
    %2 = arith.cmpi ne, %1, %c0_i32_0 : i32
    scf.if %2 {
      %cst_171 = arith.constant 0.000000e+00 : f32
      %279 = vector.broadcast %cst_171 : f32 to vector<29x128xf32>
      %c0_172 = arith.constant 0 : index
      %c0_173 = arith.constant 0 : index
      %280 = vector.load %arg6[%c0_172, %c0_173] : memref<29x128xf32, #tpu.memory_space<vmem>>, vector<29x128xf32>
      tpu.vector_store %arg6[%c0_172, %c0_173], %279 {strides = array<i32>} : memref<29x128xf32, #tpu.memory_space<vmem>>, vector<29x128xf32>,
    } else {
    }
    %c0 = arith.constant 0 : index
    %c0_1 = arith.constant 0 : index
    %c0_2 = arith.constant 0 : index
    %3 = vector.load %arg4[%c0, %c0_1, %c0_2] : memref<1x8x128xi32, #tpu.memory_space<vmem>>, vector<1x8x128xi32>
    %4 = vector.shape_cast %3 : vector<1x8x128xi32> to vector<8x128xi32>
    %c27_i32 = arith.constant 27 : i32
    %5 = vector.broadcast %c27_i32 : i32 to vector<8x128xi32>
    %6 = arith.shrsi %4, %5 : vector<8x128xi32>
    %c18_i32 = arith.constant 18 : i32
    %7 = vector.broadcast %c18_i32 : i32 to vector<8x128xi32>
    %8 = arith.shrsi %4, %7 : vector<8x128xi32>
    %c511_i32 = arith.constant 511 : i32
    %9 = vector.broadcast %c511_i32 : i32 to vector<8x128xi32>
    %10 = arith.andi %8, %9 : vector<8x128xi32>
    %11 = arith.sitofp %10 : vector<8x128xi32> to vector<8x128xf32>
    %cst = arith.constant 1.250000e-01 : f32
    %12 = vector.broadcast %cst : f32 to vector<8x128xf32>
    %13 = arith.mulf %11, %12 : vector<8x128xf32>
    %c9_i32 = arith.constant 9 : i32
    %14 = vector.broadcast %c9_i32 : i32 to vector<8x128xi32>
    %15 = arith.shrsi %4, %14 : vector<8x128xi32>
    %c511_i32_3 = arith.constant 511 : i32
    %16 = vector.broadcast %c511_i32_3 : i32 to vector<8x128xi32>
    %17 = arith.andi %15, %16 : vector<8x128xi32>
    %18 = arith.sitofp %17 : vector<8x128xi32> to vector<8x128xf32>
    %cst_4 = arith.constant 1.250000e-01 : f32
    %19 = vector.broadcast %cst_4 : f32 to vector<8x128xf32>
    %20 = arith.mulf %18, %19 : vector<8x128xf32>
    %c511_i32_5 = arith.constant 511 : i32
    %21 = vector.broadcast %c511_i32_5 : i32 to vector<8x128xi32>
    %22 = arith.andi %4, %21 : vector<8x128xi32>
    %23 = arith.sitofp %22 : vector<8x128xi32> to vector<8x128xf32>
    %cst_6 = arith.constant 1.250000e-01 : f32
    %24 = vector.broadcast %cst_6 : f32 to vector<8x128xf32>
    %25 = arith.mulf %23, %24 : vector<8x128xf32>
    %c0_7 = arith.constant 0 : index
    %c0_8 = arith.constant 0 : index
    %c0_9 = arith.constant 0 : index
    %c0_10 = arith.constant 0 : index
    %26 = vector.load %arg3[%c0_7, %c0_8, %c0_9, %c0_10] : memref<1x4x8x128xf32, #tpu.memory_space<vmem>>, vector<1x1x8x128xf32>
    %27 = vector.shape_cast %26 : vector<1x1x8x128xf32> to vector<8x128xf32>
    %c0_11 = arith.constant 0 : index
    %c1 = arith.constant 1 : index
    %c0_12 = arith.constant 0 : index
    %c0_13 = arith.constant 0 : index
    %28 = vector.load %arg3[%c0_11, %c1, %c0_12, %c0_13] : memref<1x4x8x128xf32, #tpu.memory_space<vmem>>, vector<1x1x8x128xf32>
    %29 = vector.shape_cast %28 : vector<1x1x8x128xf32> to vector<8x128xf32>
    %c0_14 = arith.constant 0 : index
    %c2 = arith.constant 2 : index
    %c0_15 = arith.constant 0 : index
    %c0_16 = arith.constant 0 : index
    %30 = vector.load %arg3[%c0_14, %c2, %c0_15, %c0_16] : memref<1x4x8x128xf32, #tpu.memory_space<vmem>>, vector<1x1x8x128xf32>
    %31 = vector.shape_cast %30 : vector<1x1x8x128xf32> to vector<8x128xf32>
    %c0_17 = arith.constant 0 : index
    %c3 = arith.constant 3 : index
    %c0_18 = arith.constant 0 : index
    %c0_19 = arith.constant 0 : index
    %32 = vector.load %arg3[%c0_17, %c3, %c0_18, %c0_19] : memref<1x4x8x128xf32, #tpu.memory_space<vmem>>, vector<1x1x8x128xf32>
    %33 = vector.shape_cast %32 : vector<1x1x8x128xf32> to vector<8x128xf32>
    %34 = arith.maximumf %27, %29 : vector<8x128xf32>
    %35 = arith.maximumf %34, %31 : vector<8x128xf32>
    %36 = arith.maximumf %35, %33 : vector<8x128xf32>
    %37 = arith.subf %27, %36 : vector<8x128xf32>
    %38 = math.exp %37 : vector<8x128xf32>
    %39 = arith.subf %29, %36 : vector<8x128xf32>
    %40 = math.exp %39 : vector<8x128xf32>
    %41 = arith.subf %31, %36 : vector<8x128xf32>
    %42 = math.exp %41 : vector<8x128xf32>
    %43 = arith.subf %33, %36 : vector<8x128xf32>
    %44 = math.exp %43 : vector<8x128xf32>
    %45 = arith.addf %38, %40 : vector<8x128xf32>
    %46 = arith.addf %45, %42 : vector<8x128xf32>
    %47 = arith.addf %46, %44 : vector<8x128xf32>
    %48 = tpu.reciprocal %47 : vector<8x128xf32> -> vector<8x128xf32>
    %49 = math.log %47 : vector<8x128xf32>
    %50 = arith.addf %36, %49 : vector<8x128xf32>
    %cst_20 = arith.constant dense<0.000000e+00> : vector<128xf32>
    %51 = vector.multi_reduction <add>, %50, %cst_20 [0] : vector<8x128xf32> to vector<128xf32>
    %52 = vector.shape_cast %51 : vector<128xf32> to vector<1x128xf32>
    %53 = arith.mulf %38, %48 : vector<8x128xf32>
    %c0_i32_21 = arith.constant 0 : i32
    %54 = vector.broadcast %c0_i32_21 : i32 to vector<8x128xi32>
    %55 = arith.cmpi eq, %6, %54 : vector<8x128xi32>
    %cst_22 = arith.constant 5.000000e-01 : f32
    %56 = vector.broadcast %cst_22 : f32 to vector<8x128xf32>
    %57 = arith.cmpf ogt, %27, %56 : vector<8x128xf32>
    %cst_23 = arith.constant 0.000000e+00 : f32
    %58 = vector.broadcast %cst_23 : f32 to vector<8x128xf32>
    %59 = arith.select %57, %27, %58 : vector<8x128xi1>, vector<8x128xf32>
    %c0_24 = arith.constant 0 : index
    %c0_25 = arith.constant 0 : index
    %60 = vector.load %arg6[%c0_24, %c0_25] : memref<29x128xf32, #tpu.memory_space<vmem>>, vector<1x128xf32>
    %cst_26 = arith.constant 0.000000e+00 : f32
    %61 = vector.broadcast %cst_26 : f32 to vector<8x128xf32>
    %62 = arith.select %55, %53, %61 : vector<8x128xi1>, vector<8x128xf32>
    %cst_27 = arith.constant dense<0.000000e+00> : vector<128xf32>
    %63 = vector.multi_reduction <add>, %62, %cst_27 [0] : vector<8x128xf32> to vector<128xf32>
    %64 = vector.shape_cast %63 : vector<128xf32> to vector<1x128xf32>
    %65 = arith.addf %60, %64 : vector<1x128xf32>
    %c0_28 = arith.constant 0 : index
    %c0_29 = arith.constant 0 : index
    %66 = vector.load %arg6[%c0_28, %c0_29] : memref<29x128xf32, #tpu.memory_space<vmem>>, vector<1x128xf32>
    tpu.vector_store %arg6[%c0_28, %c0_29], %65 {strides = array<i32>} : memref<29x128xf32, #tpu.memory_space<vmem>>, vector<1x128xf32>,
    %c1_30 = arith.constant 1 : index
    %c0_31 = arith.constant 0 : index
    %67 = vector.load %arg6[%c1_30, %c0_31] : memref<29x128xf32, #tpu.memory_space<vmem>>, vector<1x128xf32>
    %cst_32 = arith.constant dense<0.000000e+00> : vector<128xf32>
    %68 = vector.multi_reduction <add>, %53, %cst_32 [0] : vector<8x128xf32> to vector<128xf32>
    %69 = vector.shape_cast %68 : vector<128xf32> to vector<1x128xf32>
    %70 = arith.addf %67, %69 : vector<1x128xf32>
    %c1_33 = arith.constant 1 : index
    %c0_34 = arith.constant 0 : index
    %71 = vector.load %arg6[%c1_33, %c0_34] : memref<29x128xf32, #tpu.memory_space<vmem>>, vector<1x128xf32>
    tpu.vector_store %arg6[%c1_33, %c0_34], %70 {strides = array<i32>} : memref<29x128xf32, #tpu.memory_space<vmem>>, vector<1x128xf32>,
    %c2_35 = arith.constant 2 : index
    %c0_36 = arith.constant 0 : index
    %72 = vector.load %arg6[%c2_35, %c0_36] : memref<29x128xf32, #tpu.memory_space<vmem>>, vector<1x128xf32>
    %cst_37 = arith.constant 1.000000e+00 : f32
    %cst_38 = arith.constant 0.000000e+00 : f32
    %73 = vector.broadcast %cst_37 : f32 to vector<8x128xf32>
    %74 = vector.broadcast %cst_38 : f32 to vector<8x128xf32>
    %75 = arith.select %55, %73, %74 : vector<8x128xi1>, vector<8x128xf32>
    %cst_39 = arith.constant dense<0.000000e+00> : vector<128xf32>
    %76 = vector.multi_reduction <add>, %75, %cst_39 [0] : vector<8x128xf32> to vector<128xf32>
    %77 = vector.shape_cast %76 : vector<128xf32> to vector<1x128xf32>
    %78 = arith.addf %72, %77 : vector<1x128xf32>
    %c2_40 = arith.constant 2 : index
    %c0_41 = arith.constant 0 : index
    %79 = vector.load %arg6[%c2_40, %c0_41] : memref<29x128xf32, #tpu.memory_space<vmem>>, vector<1x128xf32>
    tpu.vector_store %arg6[%c2_40, %c0_41], %78 {strides = array<i32>} : memref<29x128xf32, #tpu.memory_space<vmem>>, vector<1x128xf32>,
    %c3_42 = arith.constant 3 : index
    %c0_43 = arith.constant 0 : index
    %80 = vector.load %arg6[%c3_42, %c0_43] : memref<29x128xf32, #tpu.memory_space<vmem>>, vector<1x128xf32>
    %cst_44 = arith.constant dense<0.000000e+00> : vector<128xf32>
    %81 = vector.multi_reduction <add>, %59, %cst_44 [0] : vector<8x128xf32> to vector<128xf32>
    %82 = vector.shape_cast %81 : vector<128xf32> to vector<1x128xf32>
    %83 = arith.addf %80, %82 : vector<1x128xf32>
    %c3_45 = arith.constant 3 : index
    %c0_46 = arith.constant 0 : index
    %84 = vector.load %arg6[%c3_45, %c0_46] : memref<29x128xf32, #tpu.memory_space<vmem>>, vector<1x128xf32>
    tpu.vector_store %arg6[%c3_45, %c0_46], %83 {strides = array<i32>} : memref<29x128xf32, #tpu.memory_space<vmem>>, vector<1x128xf32>,
    %c4 = arith.constant 4 : index
    %c0_47 = arith.constant 0 : index
    %85 = vector.load %arg6[%c4, %c0_47] : memref<29x128xf32, #tpu.memory_space<vmem>>, vector<1x128xf32>
    %86 = arith.mulf %59, %13 : vector<8x128xf32>
    %cst_48 = arith.constant dense<0.000000e+00> : vector<128xf32>
    %87 = vector.multi_reduction <add>, %86, %cst_48 [0] : vector<8x128xf32> to vector<128xf32>
    %88 = vector.shape_cast %87 : vector<128xf32> to vector<1x128xf32>
    %89 = arith.addf %85, %88 : vector<1x128xf32>
    %c4_49 = arith.constant 4 : index
    %c0_50 = arith.constant 0 : index
    %90 = vector.load %arg6[%c4_49, %c0_50] : memref<29x128xf32, #tpu.memory_space<vmem>>, vector<1x128xf32>
    tpu.vector_store %arg6[%c4_49, %c0_50], %89 {strides = array<i32>} : memref<29x128xf32, #tpu.memory_space<vmem>>, vector<1x128xf32>,
    %c5 = arith.constant 5 : index
    %c0_51 = arith.constant 0 : index
    %91 = vector.load %arg6[%c5, %c0_51] : memref<29x128xf32, #tpu.memory_space<vmem>>, vector<1x128xf32>
    %92 = arith.mulf %59, %20 : vector<8x128xf32>
    %cst_52 = arith.constant dense<0.000000e+00> : vector<128xf32>
    %93 = vector.multi_reduction <add>, %92, %cst_52 [0] : vector<8x128xf32> to vector<128xf32>
    %94 = vector.shape_cast %93 : vector<128xf32> to vector<1x128xf32>
    %95 = arith.addf %91, %94 : vector<1x128xf32>
    %c5_53 = arith.constant 5 : index
    %c0_54 = arith.constant 0 : index
    %96 = vector.load %arg6[%c5_53, %c0_54] : memref<29x128xf32, #tpu.memory_space<vmem>>, vector<1x128xf32>
    tpu.vector_store %arg6[%c5_53, %c0_54], %95 {strides = array<i32>} : memref<29x128xf32, #tpu.memory_space<vmem>>, vector<1x128xf32>,
    %c6 = arith.constant 6 : index
    %c0_55 = arith.constant 0 : index
    %97 = vector.load %arg6[%c6, %c0_55] : memref<29x128xf32, #tpu.memory_space<vmem>>, vector<1x128xf32>
    %98 = arith.mulf %59, %25 : vector<8x128xf32>
    %cst_56 = arith.constant dense<0.000000e+00> : vector<128xf32>
    %99 = vector.multi_reduction <add>, %98, %cst_56 [0] : vector<8x128xf32> to vector<128xf32>
    %100 = vector.shape_cast %99 : vector<128xf32> to vector<1x128xf32>
    %101 = arith.addf %97, %100 : vector<1x128xf32>
    %c6_57 = arith.constant 6 : index
    %c0_58 = arith.constant 0 : index
    %102 = vector.load %arg6[%c6_57, %c0_58] : memref<29x128xf32, #tpu.memory_space<vmem>>, vector<1x128xf32>
    tpu.vector_store %arg6[%c6_57, %c0_58], %101 {strides = array<i32>} : memref<29x128xf32, #tpu.memory_space<vmem>>, vector<1x128xf32>,
    %cst_59 = arith.constant 0.000000e+00 : f32
    %103 = vector.broadcast %cst_59 : f32 to vector<8x128xf32>
    %104 = arith.select %55, %27, %103 : vector<8x128xi1>, vector<8x128xf32>
    %cst_60 = arith.constant dense<0.000000e+00> : vector<128xf32>
    %105 = vector.multi_reduction <add>, %104, %cst_60 [0] : vector<8x128xf32> to vector<128xf32>
    %106 = vector.shape_cast %105 : vector<128xf32> to vector<1x128xf32>
    %107 = arith.subf %52, %106 : vector<1x128xf32>
    %108 = arith.mulf %40, %48 : vector<8x128xf32>
    %c1_i32 = arith.constant 1 : i32
    %109 = vector.broadcast %c1_i32 : i32 to vector<8x128xi32>
    %110 = arith.cmpi eq, %6, %109 : vector<8x128xi32>
    %cst_61 = arith.constant 5.000000e-01 : f32
    %111 = vector.broadcast %cst_61 : f32 to vector<8x128xf32>
    %112 = arith.cmpf ogt, %29, %111 : vector<8x128xf32>
    %cst_62 = arith.constant 0.000000e+00 : f32
    %113 = vector.broadcast %cst_62 : f32 to vector<8x128xf32>
    %114 = arith.select %112, %29, %113 : vector<8x128xi1>, vector<8x128xf32>
    %c7 = arith.constant 7 : index
    %c0_63 = arith.constant 0 : index
    %115 = vector.load %arg6[%c7, %c0_63] : memref<29x128xf32, #tpu.memory_space<vmem>>, vector<1x128xf32>
    %cst_64 = arith.constant 0.000000e+00 : f32
    %116 = vector.broadcast %cst_64 : f32 to vector<8x128xf32>
    %117 = arith.select %110, %108, %116 : vector<8x128xi1>, vector<8x128xf32>
    %cst_65 = arith.constant dense<0.000000e+00> : vector<128xf32>
    %118 = vector.multi_reduction <add>, %117, %cst_65 [0] : vector<8x128xf32> to vector<128xf32>
    %119 = vector.shape_cast %118 : vector<128xf32> to vector<1x128xf32>
    %120 = arith.addf %115, %119 : vector<1x128xf32>
    %c7_66 = arith.constant 7 : index
    %c0_67 = arith.constant 0 : index
    %121 = vector.load %arg6[%c7_66, %c0_67] : memref<29x128xf32, #tpu.memory_space<vmem>>, vector<1x128xf32>
    tpu.vector_store %arg6[%c7_66, %c0_67], %120 {strides = array<i32>} : memref<29x128xf32, #tpu.memory_space<vmem>>, vector<1x128xf32>,
    %c8 = arith.constant 8 : index
    %c0_68 = arith.constant 0 : index
    %122 = vector.load %arg6[%c8, %c0_68] : memref<29x128xf32, #tpu.memory_space<vmem>>, vector<1x128xf32>
    %cst_69 = arith.constant dense<0.000000e+00> : vector<128xf32>
    %123 = vector.multi_reduction <add>, %108, %cst_69 [0] : vector<8x128xf32> to vector<128xf32>
    %124 = vector.shape_cast %123 : vector<128xf32> to vector<1x128xf32>
    %125 = arith.addf %122, %124 : vector<1x128xf32>
    %c8_70 = arith.constant 8 : index
    %c0_71 = arith.constant 0 : index
    %126 = vector.load %arg6[%c8_70, %c0_71] : memref<29x128xf32, #tpu.memory_space<vmem>>, vector<1x128xf32>
    tpu.vector_store %arg6[%c8_70, %c0_71], %125 {strides = array<i32>} : memref<29x128xf32, #tpu.memory_space<vmem>>, vector<1x128xf32>,
    %c9 = arith.constant 9 : index
    %c0_72 = arith.constant 0 : index
    %127 = vector.load %arg6[%c9, %c0_72] : memref<29x128xf32, #tpu.memory_space<vmem>>, vector<1x128xf32>
    %cst_73 = arith.constant 1.000000e+00 : f32
    %cst_74 = arith.constant 0.000000e+00 : f32
    %128 = vector.broadcast %cst_73 : f32 to vector<8x128xf32>
    %129 = vector.broadcast %cst_74 : f32 to vector<8x128xf32>
    %130 = arith.select %110, %128, %129 : vector<8x128xi1>, vector<8x128xf32>
    %cst_75 = arith.constant dense<0.000000e+00> : vector<128xf32>
    %131 = vector.multi_reduction <add>, %130, %cst_75 [0] : vector<8x128xf32> to vector<128xf32>
    %132 = vector.shape_cast %131 : vector<128xf32> to vector<1x128xf32>
    %133 = arith.addf %127, %132 : vector<1x128xf32>
    %c9_76 = arith.constant 9 : index
    %c0_77 = arith.constant 0 : index
    %134 = vector.load %arg6[%c9_76, %c0_77] : memref<29x128xf32, #tpu.memory_space<vmem>>, vector<1x128xf32>
    tpu.vector_store %arg6[%c9_76, %c0_77], %133 {strides = array<i32>} : memref<29x128xf32, #tpu.memory_space<vmem>>, vector<1x128xf32>,
    %c10 = arith.constant 10 : index
    %c0_78 = arith.constant 0 : index
    %135 = vector.load %arg6[%c10, %c0_78] : memref<29x128xf32, #tpu.memory_space<vmem>>, vector<1x128xf32>
    %cst_79 = arith.constant dense<0.000000e+00> : vector<128xf32>
    %136 = vector.multi_reduction <add>, %114, %cst_79 [0] : vector<8x128xf32> to vector<128xf32>
    %137 = vector.shape_cast %136 : vector<128xf32> to vector<1x128xf32>
    %138 = arith.addf %135, %137 : vector<1x128xf32>
    %c10_80 = arith.constant 10 : index
    %c0_81 = arith.constant 0 : index
    %139 = vector.load %arg6[%c10_80, %c0_81] : memref<29x128xf32, #tpu.memory_space<vmem>>, vector<1x128xf32>
    tpu.vector_store %arg6[%c10_80, %c0_81], %138 {strides = array<i32>} : memref<29x128xf32, #tpu.memory_space<vmem>>, vector<1x128xf32>,
    %c11 = arith.constant 11 : index
    %c0_82 = arith.constant 0 : index
    %140 = vector.load %arg6[%c11, %c0_82] : memref<29x128xf32, #tpu.memory_space<vmem>>, vector<1x128xf32>
    %141 = arith.mulf %114, %13 : vector<8x128xf32>
    %cst_83 = arith.constant dense<0.000000e+00> : vector<128xf32>
    %142 = vector.multi_reduction <add>, %141, %cst_83 [0] : vector<8x128xf32> to vector<128xf32>
    %143 = vector.shape_cast %142 : vector<128xf32> to vector<1x128xf32>
    %144 = arith.addf %140, %143 : vector<1x128xf32>
    %c11_84 = arith.constant 11 : index
    %c0_85 = arith.constant 0 : index
    %145 = vector.load %arg6[%c11_84, %c0_85] : memref<29x128xf32, #tpu.memory_space<vmem>>, vector<1x128xf32>
    tpu.vector_store %arg6[%c11_84, %c0_85], %144 {strides = array<i32>} : memref<29x128xf32, #tpu.memory_space<vmem>>, vector<1x128xf32>,
    %c12 = arith.constant 12 : index
    %c0_86 = arith.constant 0 : index
    %146 = vector.load %arg6[%c12, %c0_86] : memref<29x128xf32, #tpu.memory_space<vmem>>, vector<1x128xf32>
    %147 = arith.mulf %114, %20 : vector<8x128xf32>
    %cst_87 = arith.constant dense<0.000000e+00> : vector<128xf32>
    %148 = vector.multi_reduction <add>, %147, %cst_87 [0] : vector<8x128xf32> to vector<128xf32>
    %149 = vector.shape_cast %148 : vector<128xf32> to vector<1x128xf32>
    %150 = arith.addf %146, %149 : vector<1x128xf32>
    %c12_88 = arith.constant 12 : index
    %c0_89 = arith.constant 0 : index
    %151 = vector.load %arg6[%c12_88, %c0_89] : memref<29x128xf32, #tpu.memory_space<vmem>>, vector<1x128xf32>
    tpu.vector_store %arg6[%c12_88, %c0_89], %150 {strides = array<i32>} : memref<29x128xf32, #tpu.memory_space<vmem>>, vector<1x128xf32>,
    %c13 = arith.constant 13 : index
    %c0_90 = arith.constant 0 : index
    %152 = vector.load %arg6[%c13, %c0_90] : memref<29x128xf32, #tpu.memory_space<vmem>>, vector<1x128xf32>
    %153 = arith.mulf %114, %25 : vector<8x128xf32>
    %cst_91 = arith.constant dense<0.000000e+00> : vector<128xf32>
    %154 = vector.multi_reduction <add>, %153, %cst_91 [0] : vector<8x128xf32> to vector<128xf32>
    %155 = vector.shape_cast %154 : vector<128xf32> to vector<1x128xf32>
    %156 = arith.addf %152, %155 : vector<1x128xf32>
    %c13_92 = arith.constant 13 : index
    %c0_93 = arith.constant 0 : index
    %157 = vector.load %arg6[%c13_92, %c0_93] : memref<29x128xf32, #tpu.memory_space<vmem>>, vector<1x128xf32>
    tpu.vector_store %arg6[%c13_92, %c0_93], %156 {strides = array<i32>} : memref<29x128xf32, #tpu.memory_space<vmem>>, vector<1x128xf32>,
    %cst_94 = arith.constant 0.000000e+00 : f32
    %158 = vector.broadcast %cst_94 : f32 to vector<8x128xf32>
    %159 = arith.select %110, %29, %158 : vector<8x128xi1>, vector<8x128xf32>
    %cst_95 = arith.constant dense<0.000000e+00> : vector<128xf32>
    %160 = vector.multi_reduction <add>, %159, %cst_95 [0] : vector<8x128xf32> to vector<128xf32>
    %161 = vector.shape_cast %160 : vector<128xf32> to vector<1x128xf32>
    %162 = arith.subf %107, %161 : vector<1x128xf32>
    %163 = arith.mulf %42, %48 : vector<8x128xf32>
    %c2_i32 = arith.constant 2 : i32
    %164 = vector.broadcast %c2_i32 : i32 to vector<8x128xi32>
    %165 = arith.cmpi eq, %6, %164 : vector<8x128xi32>
    %cst_96 = arith.constant 5.000000e-01 : f32
    %166 = vector.broadcast %cst_96 : f32 to vector<8x128xf32>
    %167 = arith.cmpf ogt, %31, %166 : vector<8x128xf32>
    %cst_97 = arith.constant 0.000000e+00 : f32
    %168 = vector.broadcast %cst_97 : f32 to vector<8x128xf32>
    %169 = arith.select %167, %31, %168 : vector<8x128xi1>, vector<8x128xf32>
    %c14 = arith.constant 14 : index
    %c0_98 = arith.constant 0 : index
    %170 = vector.load %arg6[%c14, %c0_98] : memref<29x128xf32, #tpu.memory_space<vmem>>, vector<1x128xf32>
    %cst_99 = arith.constant 0.000000e+00 : f32
    %171 = vector.broadcast %cst_99 : f32 to vector<8x128xf32>
    %172 = arith.select %165, %163, %171 : vector<8x128xi1>, vector<8x128xf32>
    %cst_100 = arith.constant dense<0.000000e+00> : vector<128xf32>
    %173 = vector.multi_reduction <add>, %172, %cst_100 [0] : vector<8x128xf32> to vector<128xf32>
    %174 = vector.shape_cast %173 : vector<128xf32> to vector<1x128xf32>
    %175 = arith.addf %170, %174 : vector<1x128xf32>
    %c14_101 = arith.constant 14 : index
    %c0_102 = arith.constant 0 : index
    %176 = vector.load %arg6[%c14_101, %c0_102] : memref<29x128xf32, #tpu.memory_space<vmem>>, vector<1x128xf32>
    tpu.vector_store %arg6[%c14_101, %c0_102], %175 {strides = array<i32>} : memref<29x128xf32, #tpu.memory_space<vmem>>, vector<1x128xf32>,
    %c15 = arith.constant 15 : index
    %c0_103 = arith.constant 0 : index
    %177 = vector.load %arg6[%c15, %c0_103] : memref<29x128xf32, #tpu.memory_space<vmem>>, vector<1x128xf32>
    %cst_104 = arith.constant dense<0.000000e+00> : vector<128xf32>
    %178 = vector.multi_reduction <add>, %163, %cst_104 [0] : vector<8x128xf32> to vector<128xf32>
    %179 = vector.shape_cast %178 : vector<128xf32> to vector<1x128xf32>
    %180 = arith.addf %177, %179 : vector<1x128xf32>
    %c15_105 = arith.constant 15 : index
    %c0_106 = arith.constant 0 : index
    %181 = vector.load %arg6[%c15_105, %c0_106] : memref<29x128xf32, #tpu.memory_space<vmem>>, vector<1x128xf32>
    tpu.vector_store %arg6[%c15_105, %c0_106], %180 {strides = array<i32>} : memref<29x128xf32, #tpu.memory_space<vmem>>, vector<1x128xf32>,
    %c16 = arith.constant 16 : index
    %c0_107 = arith.constant 0 : index
    %182 = vector.load %arg6[%c16, %c0_107] : memref<29x128xf32, #tpu.memory_space<vmem>>, vector<1x128xf32>
    %cst_108 = arith.constant 1.000000e+00 : f32
    %cst_109 = arith.constant 0.000000e+00 : f32
    %183 = vector.broadcast %cst_108 : f32 to vector<8x128xf32>
    %184 = vector.broadcast %cst_109 : f32 to vector<8x128xf32>
    %185 = arith.select %165, %183, %184 : vector<8x128xi1>, vector<8x128xf32>
    %cst_110 = arith.constant dense<0.000000e+00> : vector<128xf32>
    %186 = vector.multi_reduction <add>, %185, %cst_110 [0] : vector<8x128xf32> to vector<128xf32>
    %187 = vector.shape_cast %186 : vector<128xf32> to vector<1x128xf32>
    %188 = arith.addf %182, %187 : vector<1x128xf32>
    %c16_111 = arith.constant 16 : index
    %c0_112 = arith.constant 0 : index
    %189 = vector.load %arg6[%c16_111, %c0_112] : memref<29x128xf32, #tpu.memory_space<vmem>>, vector<1x128xf32>
    tpu.vector_store %arg6[%c16_111, %c0_112], %188 {strides = array<i32>} : memref<29x128xf32, #tpu.memory_space<vmem>>, vector<1x128xf32>,
    %c17 = arith.constant 17 : index
    %c0_113 = arith.constant 0 : index
    %190 = vector.load %arg6[%c17, %c0_113] : memref<29x128xf32, #tpu.memory_space<vmem>>, vector<1x128xf32>
    %cst_114 = arith.constant dense<0.000000e+00> : vector<128xf32>
    %191 = vector.multi_reduction <add>, %169, %cst_114 [0] : vector<8x128xf32> to vector<128xf32>
    %192 = vector.shape_cast %191 : vector<128xf32> to vector<1x128xf32>
    %193 = arith.addf %190, %192 : vector<1x128xf32>
    %c17_115 = arith.constant 17 : index
    %c0_116 = arith.constant 0 : index
    %194 = vector.load %arg6[%c17_115, %c0_116] : memref<29x128xf32, #tpu.memory_space<vmem>>, vector<1x128xf32>
    tpu.vector_store %arg6[%c17_115, %c0_116], %193 {strides = array<i32>} : memref<29x128xf32, #tpu.memory_space<vmem>>, vector<1x128xf32>,
    %c18 = arith.constant 18 : index
    %c0_117 = arith.constant 0 : index
    %195 = vector.load %arg6[%c18, %c0_117] : memref<29x128xf32, #tpu.memory_space<vmem>>, vector<1x128xf32>
    %196 = arith.mulf %169, %13 : vector<8x128xf32>
    %cst_118 = arith.constant dense<0.000000e+00> : vector<128xf32>
    %197 = vector.multi_reduction <add>, %196, %cst_118 [0] : vector<8x128xf32> to vector<128xf32>
    %198 = vector.shape_cast %197 : vector<128xf32> to vector<1x128xf32>
    %199 = arith.addf %195, %198 : vector<1x128xf32>
    %c18_119 = arith.constant 18 : index
    %c0_120 = arith.constant 0 : index
    %200 = vector.load %arg6[%c18_119, %c0_120] : memref<29x128xf32, #tpu.memory_space<vmem>>, vector<1x128xf32>
    tpu.vector_store %arg6[%c18_119, %c0_120], %199 {strides = array<i32>} : memref<29x128xf32, #tpu.memory_space<vmem>>, vector<1x128xf32>,
    %c19 = arith.constant 19 : index
    %c0_121 = arith.constant 0 : index
    %201 = vector.load %arg6[%c19, %c0_121] : memref<29x128xf32, #tpu.memory_space<vmem>>, vector<1x128xf32>
    %202 = arith.mulf %169, %20 : vector<8x128xf32>
    %cst_122 = arith.constant dense<0.000000e+00> : vector<128xf32>
    %203 = vector.multi_reduction <add>, %202, %cst_122 [0] : vector<8x128xf32> to vector<128xf32>
    %204 = vector.shape_cast %203 : vector<128xf32> to vector<1x128xf32>
    %205 = arith.addf %201, %204 : vector<1x128xf32>
    %c19_123 = arith.constant 19 : index
    %c0_124 = arith.constant 0 : index
    %206 = vector.load %arg6[%c19_123, %c0_124] : memref<29x128xf32, #tpu.memory_space<vmem>>, vector<1x128xf32>
    tpu.vector_store %arg6[%c19_123, %c0_124], %205 {strides = array<i32>} : memref<29x128xf32, #tpu.memory_space<vmem>>, vector<1x128xf32>,
    %c20 = arith.constant 20 : index
    %c0_125 = arith.constant 0 : index
    %207 = vector.load %arg6[%c20, %c0_125] : memref<29x128xf32, #tpu.memory_space<vmem>>, vector<1x128xf32>
    %208 = arith.mulf %169, %25 : vector<8x128xf32>
    %cst_126 = arith.constant dense<0.000000e+00> : vector<128xf32>
    %209 = vector.multi_reduction <add>, %208, %cst_126 [0] : vector<8x128xf32> to vector<128xf32>
    %210 = vector.shape_cast %209 : vector<128xf32> to vector<1x128xf32>
    %211 = arith.addf %207, %210 : vector<1x128xf32>
    %c20_127 = arith.constant 20 : index
    %c0_128 = arith.constant 0 : index
    %212 = vector.load %arg6[%c20_127, %c0_128] : memref<29x128xf32, #tpu.memory_space<vmem>>, vector<1x128xf32>
    tpu.vector_store %arg6[%c20_127, %c0_128], %211 {strides = array<i32>} : memref<29x128xf32, #tpu.memory_space<vmem>>, vector<1x128xf32>,
    %cst_129 = arith.constant 0.000000e+00 : f32
    %213 = vector.broadcast %cst_129 : f32 to vector<8x128xf32>
    %214 = arith.select %165, %31, %213 : vector<8x128xi1>, vector<8x128xf32>
    %cst_130 = arith.constant dense<0.000000e+00> : vector<128xf32>
    %215 = vector.multi_reduction <add>, %214, %cst_130 [0] : vector<8x128xf32> to vector<128xf32>
    %216 = vector.shape_cast %215 : vector<128xf32> to vector<1x128xf32>
    %217 = arith.subf %162, %216 : vector<1x128xf32>
    %218 = arith.mulf %44, %48 : vector<8x128xf32>
    %c3_i32 = arith.constant 3 : i32
    %219 = vector.broadcast %c3_i32 : i32 to vector<8x128xi32>
    %220 = arith.cmpi eq, %6, %219 : vector<8x128xi32>
    %cst_131 = arith.constant 5.000000e-01 : f32
    %221 = vector.broadcast %cst_131 : f32 to vector<8x128xf32>
    %222 = arith.cmpf ogt, %33, %221 : vector<8x128xf32>
    %cst_132 = arith.constant 0.000000e+00 : f32
    %223 = vector.broadcast %cst_132 : f32 to vector<8x128xf32>
    %224 = arith.select %222, %33, %223 : vector<8x128xi1>, vector<8x128xf32>
    %c21 = arith.constant 21 : index
    %c0_133 = arith.constant 0 : index
    %225 = vector.load %arg6[%c21, %c0_133] : memref<29x128xf32, #tpu.memory_space<vmem>>, vector<1x128xf32>
    %cst_134 = arith.constant 0.000000e+00 : f32
    %226 = vector.broadcast %cst_134 : f32 to vector<8x128xf32>
    %227 = arith.select %220, %218, %226 : vector<8x128xi1>, vector<8x128xf32>
    %cst_135 = arith.constant dense<0.000000e+00> : vector<128xf32>
    %228 = vector.multi_reduction <add>, %227, %cst_135 [0] : vector<8x128xf32> to vector<128xf32>
    %229 = vector.shape_cast %228 : vector<128xf32> to vector<1x128xf32>
    %230 = arith.addf %225, %229 : vector<1x128xf32>
    %c21_136 = arith.constant 21 : index
    %c0_137 = arith.constant 0 : index
    %231 = vector.load %arg6[%c21_136, %c0_137] : memref<29x128xf32, #tpu.memory_space<vmem>>, vector<1x128xf32>
    tpu.vector_store %arg6[%c21_136, %c0_137], %230 {strides = array<i32>} : memref<29x128xf32, #tpu.memory_space<vmem>>, vector<1x128xf32>,
    %c22 = arith.constant 22 : index
    %c0_138 = arith.constant 0 : index
    %232 = vector.load %arg6[%c22, %c0_138] : memref<29x128xf32, #tpu.memory_space<vmem>>, vector<1x128xf32>
    %cst_139 = arith.constant dense<0.000000e+00> : vector<128xf32>
    %233 = vector.multi_reduction <add>, %218, %cst_139 [0] : vector<8x128xf32> to vector<128xf32>
    %234 = vector.shape_cast %233 : vector<128xf32> to vector<1x128xf32>
    %235 = arith.addf %232, %234 : vector<1x128xf32>
    %c22_140 = arith.constant 22 : index
    %c0_141 = arith.constant 0 : index
    %236 = vector.load %arg6[%c22_140, %c0_141] : memref<29x128xf32, #tpu.memory_space<vmem>>, vector<1x128xf32>
    tpu.vector_store %arg6[%c22_140, %c0_141], %235 {strides = array<i32>} : memref<29x128xf32, #tpu.memory_space<vmem>>, vector<1x128xf32>,
    %c23 = arith.constant 23 : index
    %c0_142 = arith.constant 0 : index
    %237 = vector.load %arg6[%c23, %c0_142] : memref<29x128xf32, #tpu.memory_space<vmem>>, vector<1x128xf32>
    %cst_143 = arith.constant 1.000000e+00 : f32
    %cst_144 = arith.constant 0.000000e+00 : f32
    %238 = vector.broadcast %cst_143 : f32 to vector<8x128xf32>
    %239 = vector.broadcast %cst_144 : f32 to vector<8x128xf32>
    %240 = arith.select %220, %238, %239 : vector<8x128xi1>, vector<8x128xf32>
    %cst_145 = arith.constant dense<0.000000e+00> : vector<128xf32>
    %241 = vector.multi_reduction <add>, %240, %cst_145 [0] : vector<8x128xf32> to vector<128xf32>
    %242 = vector.shape_cast %241 : vector<128xf32> to vector<1x128xf32>
    %243 = arith.addf %237, %242 : vector<1x128xf32>
    %c23_146 = arith.constant 23 : index
    %c0_147 = arith.constant 0 : index
    %244 = vector.load %arg6[%c23_146, %c0_147] : memref<29x128xf32, #tpu.memory_space<vmem>>, vector<1x128xf32>
    tpu.vector_store %arg6[%c23_146, %c0_147], %243 {strides = array<i32>} : memref<29x128xf32, #tpu.memory_space<vmem>>, vector<1x128xf32>,
    %c24 = arith.constant 24 : index
    %c0_148 = arith.constant 0 : index
    %245 = vector.load %arg6[%c24, %c0_148] : memref<29x128xf32, #tpu.memory_space<vmem>>, vector<1x128xf32>
    %cst_149 = arith.constant dense<0.000000e+00> : vector<128xf32>
    %246 = vector.multi_reduction <add>, %224, %cst_149 [0] : vector<8x128xf32> to vector<128xf32>
    %247 = vector.shape_cast %246 : vector<128xf32> to vector<1x128xf32>
    %248 = arith.addf %245, %247 : vector<1x128xf32>
    %c24_150 = arith.constant 24 : index
    %c0_151 = arith.constant 0 : index
    %249 = vector.load %arg6[%c24_150, %c0_151] : memref<29x128xf32, #tpu.memory_space<vmem>>, vector<1x128xf32>
    tpu.vector_store %arg6[%c24_150, %c0_151], %248 {strides = array<i32>} : memref<29x128xf32, #tpu.memory_space<vmem>>, vector<1x128xf32>,
    %c25 = arith.constant 25 : index
    %c0_152 = arith.constant 0 : index
    %250 = vector.load %arg6[%c25, %c0_152] : memref<29x128xf32, #tpu.memory_space<vmem>>, vector<1x128xf32>
    %251 = arith.mulf %224, %13 : vector<8x128xf32>
    %cst_153 = arith.constant dense<0.000000e+00> : vector<128xf32>
    %252 = vector.multi_reduction <add>, %251, %cst_153 [0] : vector<8x128xf32> to vector<128xf32>
    %253 = vector.shape_cast %252 : vector<128xf32> to vector<1x128xf32>
    %254 = arith.addf %250, %253 : vector<1x128xf32>
    %c25_154 = arith.constant 25 : index
    %c0_155 = arith.constant 0 : index
    %255 = vector.load %arg6[%c25_154, %c0_155] : memref<29x128xf32, #tpu.memory_space<vmem>>, vector<1x128xf32>
    tpu.vector_store %arg6[%c25_154, %c0_155], %254 {strides = array<i32>} : memref<29x128xf32, #tpu.memory_space<vmem>>, vector<1x128xf32>,
    %c26 = arith.constant 26 : index
    %c0_156 = arith.constant 0 : index
    %256 = vector.load %arg6[%c26, %c0_156] : memref<29x128xf32, #tpu.memory_space<vmem>>, vector<1x128xf32>
    %257 = arith.mulf %224, %20 : vector<8x128xf32>
    %cst_157 = arith.constant dense<0.000000e+00> : vector<128xf32>
    %258 = vector.multi_reduction <add>, %257, %cst_157 [0] : vector<8x128xf32> to vector<128xf32>
    %259 = vector.shape_cast %258 : vector<128xf32> to vector<1x128xf32>
    %260 = arith.addf %256, %259 : vector<1x128xf32>
    %c26_158 = arith.constant 26 : index
    %c0_159 = arith.constant 0 : index
    %261 = vector.load %arg6[%c26_158, %c0_159] : memref<29x128xf32, #tpu.memory_space<vmem>>, vector<1x128xf32>
    tpu.vector_store %arg6[%c26_158, %c0_159], %260 {strides = array<i32>} : memref<29x128xf32, #tpu.memory_space<vmem>>, vector<1x128xf32>,
    %c27 = arith.constant 27 : index
    %c0_160 = arith.constant 0 : index
    %262 = vector.load %arg6[%c27, %c0_160] : memref<29x128xf32, #tpu.memory_space<vmem>>, vector<1x128xf32>
    %263 = arith.mulf %224, %25 : vector<8x128xf32>
    %cst_161 = arith.constant dense<0.000000e+00> : vector<128xf32>
    %264 = vector.multi_reduction <add>, %263, %cst_161 [0] : vector<8x128xf32> to vector<128xf32>
    %265 = vector.shape_cast %264 : vector<128xf32> to vector<1x128xf32>
    %266 = arith.addf %262, %265 : vector<1x128xf32>
    %c27_162 = arith.constant 27 : index
    %c0_163 = arith.constant 0 : index
    %267 = vector.load %arg6[%c27_162, %c0_163] : memref<29x128xf32, #tpu.memory_space<vmem>>, vector<1x128xf32>
    tpu.vector_store %arg6[%c27_162, %c0_163], %266 {strides = array<i32>} : memref<29x128xf32, #tpu.memory_space<vmem>>, vector<1x128xf32>,
    %cst_164 = arith.constant 0.000000e+00 : f32
    %268 = vector.broadcast %cst_164 : f32 to vector<8x128xf32>
    %269 = arith.select %220, %33, %268 : vector<8x128xi1>, vector<8x128xf32>
    %cst_165 = arith.constant dense<0.000000e+00> : vector<128xf32>
    %270 = vector.multi_reduction <add>, %269, %cst_165 [0] : vector<8x128xf32> to vector<128xf32>
    %271 = vector.shape_cast %270 : vector<128xf32> to vector<1x128xf32>
    %272 = arith.subf %217, %271 : vector<1x128xf32>
    %c28 = arith.constant 28 : index
    %c0_166 = arith.constant 0 : index
    %273 = vector.load %arg6[%c28, %c0_166] : memref<29x128xf32, #tpu.memory_space<vmem>>, vector<1x128xf32>
    %274 = arith.addf %273, %272 : vector<1x128xf32>
    %c28_167 = arith.constant 28 : index
    %c0_168 = arith.constant 0 : index
    %275 = vector.load %arg6[%c28_167, %c0_168] : memref<29x128xf32, #tpu.memory_space<vmem>>, vector<1x128xf32>
    tpu.vector_store %arg6[%c28_167, %c0_168], %274 {strides = array<i32>} : memref<29x128xf32, #tpu.memory_space<vmem>>, vector<1x128xf32>,
    %c0_i32_169 = arith.constant 0 : i32
    %276 = arith.cmpi eq, %arg2, %c0_i32_169 : i32
    %277 = arith.extui %276 : i1 to i32
    %c0_i32_170 = arith.constant 0 : i32
    %278 = arith.cmpi ne, %277, %c0_i32_170 : i32
    scf.if %278 {
      %c0_171 = arith.constant 0 : index
      %c0_172 = arith.constant 0 : index
      %279 = vector.load %arg6[%c0_171, %c0_172] : memref<29x128xf32, #tpu.memory_space<vmem>>, vector<29x128xf32>
      %c0_173 = arith.constant 0 : index
      %c0_174 = arith.constant 0 : index
      %c0_175 = arith.constant 0 : index
      %c0_176 = arith.constant 0 : index
      %280 = vector.load %arg5[%c0_173, %c0_174, %c0_175, %c0_176] : memref<1x1x29x128xf32, #tpu.memory_space<vmem>>, vector<1x1x29x128xf32>
      %281 = vector.shape_cast %280 : vector<1x1x29x128xf32> to vector<29x128xf32>
      %282 = vector.shape_cast %279 : vector<29x128xf32> to vector<1x1x29x128xf32>
      tpu.vector_store %arg5[%c0_173, %c0_174, %c0_175, %c0_176], %282 {strides = array<i32>} : memref<1x1x29x128xf32, #tpu.memory_space<vmem>>, vector<1x1x29x128xf32>,
    } else {
    }
    return
  }
  func.func @transform_0(%arg0: i32, %arg1: i32, %arg2: i32) -> (i32, i32, i32, i32) {
    %c1_i32 = arith.constant 1 : i32
    %0 = arith.muli %arg0, %c1_i32 : i32
    %1 = arith.addi %0, %arg2 : i32
    %c0_i32 = arith.constant 0 : i32
    %c0_i32_0 = arith.constant 0 : i32
    %c0_i32_1 = arith.constant 0 : i32
    return %arg1, %c0_i32, %1, %c0_i32_0 : i32, i32, i32, i32
  }
  func.func @transform_1(%arg0: i32, %arg1: i32, %arg2: i32) -> (i32, i32, i32) {
    %c1_i32 = arith.constant 1 : i32
    %0 = arith.muli %arg0, %c1_i32 : i32
    %1 = arith.addi %0, %arg2 : i32
    %c0_i32 = arith.constant 0 : i32
    %c0_i32_0 = arith.constant 0 : i32
    return %arg1, %1, %c0_i32 : i32, i32, i32
  }
  func.func @transform_2(%arg0: i32, %arg1: i32, %arg2: i32) -> (i32, i32, i32, i32) {
    %c0_i32 = arith.constant 0 : i32
    %c0_i32_0 = arith.constant 0 : i32
    %c0_i32_1 = arith.constant 0 : i32
    return %arg0, %arg1, %c0_i32, %c0_i32_0 : i32, i32, i32, i32
  }
}

</mosaic_0001>

<llo_original>
// kernel: tpu_custom_call.1
$region0: #{tpu_custom_call.1}
  #allocation0 [shape = 'u32[]', space=smem, size = 0x4, offset = 0x4, fixed_abs, tag = 'smem constant byte address 0x4 - core index']
  #allocation1 [shape = 'u32[144,128]{1,0:T(1,128)}', space=vmem, size = 0x12000, scoped, tag = 'internal scratch']
  #allocation2 [shape = 'f32[29,128]{1,0:T(8,128)}', space=vmem, size = 0x4000, scoped, tag = 'scratch operand']
  %s0 = inlined_call_operand.hbm [shape: f32[2,4,16,128], index: 0, kind: input, shape index: {}]
  %s1 = inlined_call_operand.hbm [shape: s32[2,16,128], index: 1, kind: input, shape index: {}]
  %s2 = inlined_call_operand.vmem [shape: f32[2,2,29,128], index: 2, kind: output, shape index: {}]
  %s3 = sld [smem:[#allocation0]]
  $region57: #{tpu_custom_call.1} parent=0
    _
  %s5 = ssub.s32 1, %s3
  %s6 = scalar_select 0, %s5, %s3
  $region1: #{tpu_custom_call.1} parent=0
    #allocation3 [shape = 'u8[32768]{0}', space=vmem, size = 0x8000, scoped, tag = 'input window, operand 0']
    #allocation4 [shape = 's32[2]{0}', space=sflag, size = 0x8, scoped, tag = 'scoped memory for tpu_custom_call.1']
    #allocation5 [shape = 'u8[8192]{0}', space=vmem, size = 0x2000, scoped, tag = 'input window, operand 1']
    #allocation6 [shape = 's32[2]{0}', space=sflag, size = 0x8, scoped, tag = 'scoped memory for tpu_custom_call.1']
    %7 = vsyncpa [#allocation4], 0
    %s8 = scalar_lea.sflag [#allocation4], 1
    %9 = vsyncpa %s8, 0
    %10 = vsyncpa [#allocation6], 0
    %s11 = scalar_lea.sflag [#allocation6], 1
    %12 = vsyncpa %s11, 0
    loop: start=0, step=1, limit=6
    $region2: #{tpu_custom_call.1} parent=1 // loop_pre_header
      _
    $region3: #{tpu_custom_call.1} parent=1 // loop_header
      %s14 = sphi 0, %s18
      %p15 = scmp.ge.s32.totalorder %s14, 6
      %s21 = sphi 0, %s40
      %s22 = sphi 0, %s36
      %s23 = sphi 0, %s32
      %s24 = sphi 0, %s21
      %s25 = sphi 0, %s22
      %s26 = sphi 0, %s23
      %s27 = sphi 0, %s24
      %s28 = sphi 0, %s25
      %s29 = sphi 0, %s26
      %s47 = sphi 0, %s49
      %s50 = sphi 0, %s47
      %s51 = sphi 0, %s50
      %s67 = sphi 0, %s51
      %s77 = sphi 0, %s79
      %s80 = sphi 0, %s77
      %s81 = sphi 0, %s80
      %s97 = sphi 0, %s81
      %s105 = sphi 0, %s107
      %s108 = sphi 0, %s105
      %s109 = sphi 0, %s108
      %s125 = sphi 0, %s109
    $region4: #{tpu_custom_call.1} parent=1 // loop_header_branch
      %17 = sbr.rel (%p15) target = $region8
    $region5: #{tpu_custom_call.1} parent=1 // loop_body
      %s19 = ssub.s32 %s14, 1
      %s20 = ssub.s32 %s14, 2
      %s30 = sadd.s32 1, %s23
      %p31 = scmp.ge.s32.totalorder %s30, 1
      %s32 = scalar_select %p31, 0, %s30
      %s33 = sadd.s32 1, %s22
      %s34 = scalar_select %p31, %s33, %s22
      %p35 = scmp.ge.s32.totalorder %s34, 2
      %s36 = scalar_select %p35, 0, %s34
      %s37 = sadd.s32 1, %s21
      %s38 = scalar_select %p35, %s37, %s21
      %p39 = scmp.ge.s32.totalorder %s38, 2
      %s40 = scalar_select %p39, 0, %s38
      %s41 = sadd.s32 %s21, %s23
      %s42 = sadd.s32 %s40, %s32
      %s43 = ssub.s32 %s22, %s36
      %s44 = ssub.s32 %s41, %s42
      %s45 = sor.u32 %s43, %s44
      %p46 = scmp.eq.s32.totalorder %s45, 0
      %s48 = sadd.s32 %s47, 1
      %s49 = scalar_select %p46, %s47, %s48
      %p52 = pneg %p46
      %p53 = scmp.eq.s32.totalorder %s14, 3
      %p54 = por %p52, %p53
      %p55 = scmp.ne.s32.totalorder %s47, %s50
      %p56 = scmp.eq.s32.totalorder %s14, 0
      %p57 = por %p55, %p56
      %p58 = scmp.ne.s32.totalorder %s47, %s50
      %p59 = scmp.eq.s32.totalorder %s19, 3
      %p60 = por %p58, %p59
      %p61 = scmp.ne.s32.totalorder %s50, %s51
      %p62 = scmp.eq.s32.totalorder %s19, 0
      %p63 = por %p61, %p62
      %p64 = scmp.ne.s32.totalorder %s50, %s51
      %p65 = scmp.eq.s32.totalorder %s20, 3
      %p66 = por %p64, %p65
      %p68 = scmp.ne.s32.totalorder %s51, %s67
      %p69 = scmp.eq.s32.totalorder %s20, 0
      %p70 = por %p68, %p69
      %s71 = sadd.s32 %s21, %s23
      %s72 = sadd.s32 %s40, %s32
      %s73 = ssub.s32 %s22, %s36
      %s74 = ssub.s32 %s71, %s72
      %s75 = sor.u32 %s73, %s74
      %p76 = scmp.eq.s32.totalorder %s75, 0
      %s78 = sadd.s32 %s77, 1
      %s79 = scalar_select %p76, %s77, %s78
      %p82 = pneg %p76
      %p83 = scmp.eq.s32.totalorder %s14, 3
      %p84 = por %p82, %p83
      %p85 = scmp.ne.s32.totalorder %s77, %s80
      %p86 = scmp.eq.s32.totalorder %s14, 0
      %p87 = por %p85, %p86
      %p88 = scmp.ne.s32.totalorder %s77, %s80
      %p89 = scmp.eq.s32.totalorder %s19, 3
      %p90 = por %p88, %p89
      %p91 = scmp.ne.s32.totalorder %s80, %s81
      %p92 = scmp.eq.s32.totalorder %s19, 0
      %p93 = por %p91, %p92
      %p94 = scmp.ne.s32.totalorder %s80, %s81
      %p95 = scmp.eq.s32.totalorder %s20, 3
      %p96 = por %p94, %p95
      %p98 = scmp.ne.s32.totalorder %s81, %s97
      %p99 = scmp.eq.s32.totalorder %s20, 0
      %p100 = por %p98, %p99
      %s101 = ssub.s32 %s21, %s40
      %s102 = ssub.s32 %s22, %s36
      %s103 = sor.u32 %s101, %s102
      %p104 = scmp.eq.s32.totalorder %s103, 0
      %s106 = sadd.s32 %s105, 1
      %s107 = scalar_select %p104, %s105, %s106
      %p110 = pneg %p104
      %p111 = scmp.eq.s32.totalorder %s14, 3
      %p112 = por %p110, %p111
      %p113 = scmp.ne.s32.totalorder %s105, %s108
      %p114 = scmp.eq.s32.totalorder %s14, 0
      %p115 = por %p113, %p114
      %p116 = scmp.ne.s32.totalorder %s105, %s108
      %p117 = scmp.eq.s32.totalorder %s19, 3
      %p118 = por %p116, %p117
      %p119 = scmp.ne.s32.totalorder %s108, %s109
      %p120 = scmp.eq.s32.totalorder %s19, 0
      %p121 = por %p119, %p120
      %p122 = scmp.ne.s32.totalorder %s108, %s109
      %p123 = scmp.eq.s32.totalorder %s20, 3
      %p124 = por %p122, %p123
      %p126 = scmp.ne.s32.totalorder %s109, %s125
      %p127 = scmp.eq.s32.totalorder %s20, 0
      %p128 = por %p126, %p127
      %p129 = scmp.le.s32.totalorder 1, %s14
      %p130 = scmp.lt.s32.totalorder %s14, 5
      %p131 = pnand %p129, %p130
      %p132 = pneg %p131
      // Predicated region
      $region9: #{tpu_custom_call.1} parent=5 // pred_check
        _
      $region10: #{tpu_custom_call.1} parent=5 // pred_check_branch
        %134 = sbr.rel (%p131) target = $region12
      $region11: #{tpu_custom_call.1} parent=5 // pred_region
        %s135 = ssub.s32 %s14, 1
      $region12: #{tpu_custom_call.1} parent=5 // pred_fallthru
        _
      %p136 = scmp.lt.s32.totalorder %s14, 4
      // Predicated region
      $region13: #{tpu_custom_call.1} parent=5 // pred_check
        %p137 = pneg %p136
      $region14: #{tpu_custom_call.1} parent=5 // pred_check_branch
        %139 = sbr.rel (%p137) target = $region16
      $region15: #{tpu_custom_call.1} parent=5 // pred_region
        // Predicated region
        $region17: #{tpu_custom_call.1} parent=15 // pred_check
          %p140 = pneg %p57
        $region18: #{tpu_custom_call.1} parent=15 // pred_check_branch
          %142 = sbr.rel (%p140) target = $region20
        $region19: #{tpu_custom_call.1} parent=15 // pred_region
          %s143 = sand.u32 %s47, 1
          %s144 = scalar_lea.sflag [#allocation4], %s143
          %s145 = sand.u32 %s47, 1
          %s146 = smul.addr %s145, 32
          %s147 = scalar_lea.vmem [#allocation3], %s146
          %s148 = sadd.s32 %s21, %s23
          %s150 = ssub.s32 512, 512
          %151 = vsyncadd %s144, %s150
          %s152 = smul.addr %s22, 8
          %s153 = sadd.s32 %s148, %s152
          %s154 = smul.addr %s153, 128
          %s155 = scalar_lea.hbm %s0, %s154
          %s156 = sshll.u32 %s147, 4
          %s157 = int_to_ptr.vmem [resolvable:$true] %s156
          %162 = dma.hbm_to_vmem [thread:$0]  %s155, 512, %s157, %s144, 256, 128, 8
        $region20: #{tpu_custom_call.1} parent=15 // pred_fallthru
          _
        // Predicated region
        $region21: #{tpu_custom_call.1} parent=15 // pred_check
          %p163 = pneg %p87
        $region22: #{tpu_custom_call.1} parent=15 // pred_check_branch
          %165 = sbr.rel (%p163) target = $region24
        $region23: #{tpu_custom_call.1} parent=15 // pred_region
          %s166 = sand.u32 %s77, 1
          %s167 = scalar_lea.sflag [#allocation6], %s166
          %s168 = sand.u32 %s77, 1
          %s169 = smul.addr %s168, 8
          %s170 = scalar_lea.vmem [#allocation5], %s169
          %s171 = sadd.s32 %s21, %s23
          %s173 = ssub.s32 128, 128
          %174 = vsyncadd %s167, %s173
          %s175 = smul.addr %s22, 2
          %s176 = sadd.s32 %s171, %s175
          %s177 = smul.addr %s176, 128
          %s178 = scalar_lea.hbm %s1, %s177
          %s180 = sshll.u32 %s170, 4
          %s181 = int_to_ptr.vmem [resolvable:$true] %s180
          %183 = dma.hbm_to_vmem [thread:$0]  %s178, 128, %s181, %s167
        $region24: #{tpu_custom_call.1} parent=15 // pred_fallthru
          _
      $region16: #{tpu_custom_call.1} parent=5 // pred_fallthru
        _
      %p184 = scmp.le.s32.totalorder 1, %s14
      %p185 = scmp.lt.s32.totalorder %s14, 5
      %p186 = pnand %p184, %p185
      %p187 = pneg %p186
      // Predicated region
      $region25: #{tpu_custom_call.1} parent=5 // pred_check
        _
      $region26: #{tpu_custom_call.1} parent=5 // pred_check_branch
        %189 = sbr.rel (%p186) target = $region28
      $region27: #{tpu_custom_call.1} parent=5 // pred_region
        %s190 = ssub.s32 %s14, 1
        %s191 = sand.u32 %s50, 1
        %s192 = scalar_lea.sflag [#allocation4], %s191
        %s193 = sand.u32 %s50, 1
        %s194 = smul.addr %s193, 32
        %s195 = scalar_lea.vmem [#allocation3], %s194
        // Predicated region
        $region29: #{tpu_custom_call.1} parent=27 // pred_check
          %p196 = pneg %p63
        $region30: #{tpu_custom_call.1} parent=27 // pred_check_branch
          %198 = sbr.rel (%p196) target = $region32
        $region31: #{tpu_custom_call.1} parent=27 // pred_region
          %199 = dma.done %s192, 512
        $region32: #{tpu_custom_call.1} parent=27 // pred_fallthru
          _
        %s200 = sand.u32 %s80, 1
        %s201 = scalar_lea.sflag [#allocation6], %s200
        %s202 = sand.u32 %s80, 1
        %s203 = smul.addr %s202, 8
        %s204 = scalar_lea.vmem [#allocation5], %s203
        // Predicated region
        $region33: #{tpu_custom_call.1} parent=27 // pred_check
          %p205 = pneg %p93
        $region34: #{tpu_custom_call.1} parent=27 // pred_check_branch
          %207 = sbr.rel (%p205) target = $region36
        $region35: #{tpu_custom_call.1} parent=27 // pred_region
          %208 = dma.done %s201, 128
        $region36: #{tpu_custom_call.1} parent=27 // pred_fallthru
          _
        %s209 = sand.u32 %s50, 1
        %s210 = scalar_lea.sflag [#allocation4], %s209
        %s211 = sand.u32 %s50, 1
        %s212 = smul.addr %s211, 32
        %s213 = scalar_lea.vmem [#allocation3], %s212
        %p214 = pneg %p63
        %p215 = pneg %p60
        %s216 = sand.u32 %s80, 1
        %s217 = scalar_lea.sflag [#allocation6], %s216
        %s218 = sand.u32 %s80, 1
        %s219 = smul.addr %s218, 8
        %s220 = scalar_lea.vmem [#allocation5], %s219
        %p221 = pneg %p93
        %p222 = pneg %p90
        %p223 = pneg %p121
        %p224 = pneg %p118
        %p225 = scmp.lt.s32.totalorder %s24, 1
        %s226 = scalar_select %p225, %s24, 1
        %p227 = scmp.lt.s32.totalorder %s25, 1
        %s228 = scalar_select %p227, %s25, 1
        %s229 = smul.addr %s228, 4
        %s230 = smul.addr %s226, 8
        %s231 = sadd.s32 %s229, %s230
        %s232 = smul.addr %s231, 8
        %s233 = scalar_lea.vmem %s2, %s232
        %s234 = sadd.s32 %s24, %s26
        %s235 = sadd.s32 %s24, %s26
        %p236 = scmp.lt.s32.totalorder %s24, 1
        %s237 = scalar_select %p236, %s24, 1
        %p238 = scmp.lt.s32.totalorder %s25, 1
        %s239 = scalar_select %p238, %s25, 1
        %s240 = smul.addr %s239, 4
        %s241 = smul.addr %s237, 8
        %s242 = sadd.s32 %s240, %s241
        %s243 = smul.addr %s242, 8
        %s244 = scalar_lea.vmem %s2, %s243
        %p245 = scmp.eq.s32.totalorder %s26, 0
        // Predicated region
        $region37: #{tpu_custom_call.1} parent=27 // pred_check
          %p246 = pneg %p245
        $region38: #{tpu_custom_call.1} parent=27 // pred_check_branch
          %248 = sbr.rel (%p246) target = $region40
        $region39: #{tpu_custom_call.1} parent=27 // pred_region
          %249 = vst [vmem:[#allocation2] sm:$0xff] 0.0
          %250 = vst [vmem:[#allocation2 + $0x8] sm:$0xff] 0.0
          %251 = vst [vmem:[#allocation2 + $0x10] sm:$0xff] 0.0
          %252 = vst [vmem:[#allocation2 + $0x18] sm:$0x1f] 0.0
        $region40: #{tpu_custom_call.1} parent=27 // pred_fallthru
          _
        %v253 = vld [vmem:[%s204] sm:$0xff]
        %v254 = vshra.s32 %v253, 27
        %v255 = vshra.s32 %v253, 18
        %v256 = vand.u32 %v255, 511
        %v257 = vcvt.s32.f32 %v256
        %v258 = vmul.f32 %v257, 0.125
        %v259 = vshra.s32 %v253, 9
        %v260 = vand.u32 %v259, 511
        %v261 = vcvt.s32.f32 %v260
        %v262 = vmul.f32 %v261, 0.125
        %v263 = vand.u32 %v253, 511
        %v264 = vcvt.s32.f32 %v263
        %v265 = vmul.f32 %v264, 0.125
        %v266 = vld [vmem:[%s195] sm:$0xff]
        %s267 = scalar_lea.vmem %s195, 8 [#allocation3]
        %v268 = vld [vmem:[%s267] sm:$0xff]
        %s269 = scalar_lea.vmem %s195, 16 [#allocation3]
        %v270 = vld [vmem:[%s269] sm:$0xff]
        %s271 = scalar_lea.vmem %s195, 24 [#allocation3]
        %v272 = vld [vmem:[%s271] sm:$0xff]
        %v273 = vmax.f32 %v266, %v268
        %v274 = vmax.f32 %v273, %v270
        %v275 = vmax.f32 %v274, %v272
        %v276 = vsub.f32 %v266, %v275
        %v277 = vmul.f32 %v276, 1.442695
        %v278 = vpow.pop %v277
        %v279 = vsub.f32 %v268, %v275
        %v280 = vmul.f32 %v279, 1.442695
        %v281 = vpow.pop %v280
        %v282 = vsub.f32 %v270, %v275
        %v283 = vmul.f32 %v282, 1.442695
        %v284 = vpow.pop %v283
        %v285 = vsub.f32 %v272, %v275
        %v286 = vmul.f32 %v285, 1.442695
        %v287 = vpow.pop %v286
        %v288 = vadd.f32 %v278, %v281
        %v289 = vadd.f32 %v288, %v284
        %v290 = vadd.f32 %v289, %v287
        %v291 = vrcp.pop %v290
        %v292 = vlog2.pop %v290
        %v293 = vmul.f32 %v292, 0.6931472
        %v294 = vadd.f32 %v275, %v293
        %v295 = vrot.slane %v294, 4
        %v296 = vadd.f32 %v294, %v295
        %v297 = vrot.slane %v296, 2
        %v298 = vadd.f32 %v296, %v297
        %v299 = vrot.slane %v298, 1
        %v300 = vadd.f32 %v298, %v299
        %v301 = vmul.f32 %v278, %v291
        %vm302 = vcmp.eq.s32.totalorder %v254, 0
        %vm303 = vcmp.gt.f32.partialorder %v266, 0.5
        %v304 = vsel %vm303, %v266, 0.0
        %v305 = vld [vmem:[#allocation2] sm:$0x1]
        %v306 = vsel %vm302, %v301, 0.0
        %v307 = vrot.slane %v306, 4
        %v308 = vadd.f32 %v306, %v307
        %v309 = vrot.slane %v308, 2
        %v310 = vadd.f32 %v308, %v309
        %v311 = vrot.slane %v310, 1
        %v312 = vadd.f32 %v310, %v311
        %v313 = vadd.f32 %v305, %v312
        %314 = vst [vmem:[#allocation2] sm:$0x1] %v313
        %v315 = vld [vmem:[#allocation2 + $0x1] sm:$0x1]
        %v316 = vrot.slane %v301, 4
        %v317 = vadd.f32 %v301, %v316
        %v318 = vrot.slane %v317, 2
        %v319 = vadd.f32 %v317, %v318
        %v320 = vrot.slane %v319, 1
        %v321 = vadd.f32 %v319, %v320
        %v322 = vadd.f32 %v315, %v321
        %323 = vst [vmem:[#allocation2 + $0x1] sm:$0x1] %v322
        %v324 = vld [vmem:[#allocation2 + $0x2] sm:$0x1]
        %v325 = vsel %vm302, 1.0, 0.0
        %v326 = vrot.slane %v325, 4
        %v327 = vadd.f32 %v325, %v326
        %v328 = vrot.slane %v327, 2
        %v329 = vadd.f32 %v327, %v328
        %v330 = vrot.slane %v329, 1
        %v331 = vadd.f32 %v329, %v330
        %v332 = vadd.f32 %v324, %v331
        %333 = vst [vmem:[#allocation2 + $0x2] sm:$0x1] %v332
        %v334 = vld [vmem:[#allocation2 + $0x3] sm:$0x1]
        %v335 = vrot.slane %v304, 4
        %v336 = vadd.f32 %v304, %v335
        %v337 = vrot.slane %v336, 2
        %v338 = vadd.f32 %v336, %v337
        %v339 = vrot.slane %v338, 1
        %v340 = vadd.f32 %v338, %v339
        %v341 = vadd.f32 %v334, %v340
        %342 = vst [vmem:[#allocation2 + $0x3] sm:$0x1] %v341
        %v343 = vld [vmem:[#allocation2 + $0x4] sm:$0x1]
        %v344 = vmul.f32 %v304, %v258
        %v345 = vrot.slane %v344, 4
        %v346 = vadd.f32 %v344, %v345
        %v347 = vrot.slane %v346, 2
        %v348 = vadd.f32 %v346, %v347
        %v349 = vrot.slane %v348, 1
        %v350 = vadd.f32 %v348, %v349
        %v351 = vadd.f32 %v343, %v350
        %352 = vst [vmem:[#allocation2 + $0x4] sm:$0x1] %v351
        %v353 = vld [vmem:[#allocation2 + $0x5] sm:$0x1]
        %v354 = vmul.f32 %v304, %v262
        %v355 = vrot.slane %v354, 4
        %v356 = vadd.f32 %v354, %v355
        %v357 = vrot.slane %v356, 2
        %v358 = vadd.f32 %v356, %v357
        %v359 = vrot.slane %v358, 1
        %v360 = vadd.f32 %v358, %v359
        %v361 = vadd.f32 %v353, %v360
        %362 = vst [vmem:[#allocation2 + $0x5] sm:$0x1] %v361
        %v363 = vld [vmem:[#allocation2 + $0x6] sm:$0x1]
        %v364 = vmul.f32 %v304, %v265
        %v365 = vrot.slane %v364, 4
        %v366 = vadd.f32 %v364, %v365
        %v367 = vrot.slane %v366, 2
        %v368 = vadd.f32 %v366, %v367
        %v369 = vrot.slane %v368, 1
        %v370 = vadd.f32 %v368, %v369
        %v371 = vadd.f32 %v363, %v370
        %372 = vst [vmem:[#allocation2 + $0x6] sm:$0x1] %v371
        %v373 = vsel %vm302, %v266, 0.0
        %v374 = vrot.slane %v373, 4
        %v375 = vadd.f32 %v373, %v374
        %v376 = vrot.slane %v375, 2
        %v377 = vadd.f32 %v375, %v376
        %v378 = vrot.slane %v377, 1
        %v379 = vadd.f32 %v377, %v378
        %v380 = vsub.f32 %v300, %v379
        %v381 = vmul.f32 %v281, %v291
        %vm382 = vcmp.eq.s32.totalorder %v254, 1
        %vm383 = vcmp.gt.f32.partialorder %v268, 0.5
        %v384 = vsel %vm383, %v268, 0.0
        %v385 = vld [vmem:[#allocation2 + $0x7] sm:$0x1]
        %v386 = vsel %vm382, %v381, 0.0
        %v387 = vrot.slane %v386, 4
        %v388 = vadd.f32 %v386, %v387
        %v389 = vrot.slane %v388, 2
        %v390 = vadd.f32 %v388, %v389
        %v391 = vrot.slane %v390, 1
        %v392 = vadd.f32 %v390, %v391
        %v393 = vadd.f32 %v385, %v392
        %394 = vst [vmem:[#allocation2 + $0x7] sm:$0x1] %v393
        %v395 = vld [vmem:[#allocation2 + $0x8] sm:$0x1]
        %v396 = vrot.slane %v381, 4
        %v397 = vadd.f32 %v381, %v396
        %v398 = vrot.slane %v397, 2
        %v399 = vadd.f32 %v397, %v398
        %v400 = vrot.slane %v399, 1
        %v401 = vadd.f32 %v399, %v400
        %v402 = vadd.f32 %v395, %v401
        %403 = vst [vmem:[#allocation2 + $0x8] sm:$0x1] %v402
        %v404 = vld [vmem:[#allocation2 + $0x9] sm:$0x1]
        %v405 = vsel %vm382, 1.0, 0.0
        %v406 = vrot.slane %v405, 4
        %v407 = vadd.f32 %v405, %v406
        %v408 = vrot.slane %v407, 2
        %v409 = vadd.f32 %v407, %v408
        %v410 = vrot.slane %v409, 1
        %v411 = vadd.f32 %v409, %v410
        %v412 = vadd.f32 %v404, %v411
        %413 = vst [vmem:[#allocation2 + $0x9] sm:$0x1] %v412
        %v414 = vld [vmem:[#allocation2 + $0xa] sm:$0x1]
        %v415 = vrot.slane %v384, 4
        %v416 = vadd.f32 %v384, %v415
        %v417 = vrot.slane %v416, 2
        %v418 = vadd.f32 %v416, %v417
        %v419 = vrot.slane %v418, 1
        %v420 = vadd.f32 %v418, %v419
        %v421 = vadd.f32 %v414, %v420
        %422 = vst [vmem:[#allocation2 + $0xa] sm:$0x1] %v421
        %v423 = vld [vmem:[#allocation2 + $0xb] sm:$0x1]
        %v424 = vmul.f32 %v384, %v258
        %v425 = vrot.slane %v424, 4
        %v426 = vadd.f32 %v424, %v425
        %v427 = vrot.slane %v426, 2
        %v428 = vadd.f32 %v426, %v427
        %v429 = vrot.slane %v428, 1
        %v430 = vadd.f32 %v428, %v429
        %v431 = vadd.f32 %v423, %v430
        %432 = vst [vmem:[#allocation2 + $0xb] sm:$0x1] %v431
        %v433 = vld [vmem:[#allocation2 + $0xc] sm:$0x1]
        %v434 = vmul.f32 %v384, %v262
        %v435 = vrot.slane %v434, 4
        %v436 = vadd.f32 %v434, %v435
        %v437 = vrot.slane %v436, 2
        %v438 = vadd.f32 %v436, %v437
        %v439 = vrot.slane %v438, 1
        %v440 = vadd.f32 %v438, %v439
        %v441 = vadd.f32 %v433, %v440
        %442 = vst [vmem:[#allocation2 + $0xc] sm:$0x1] %v441
        %v443 = vld [vmem:[#allocation2 + $0xd] sm:$0x1]
        %v444 = vmul.f32 %v384, %v265
        %v445 = vrot.slane %v444, 4
        %v446 = vadd.f32 %v444, %v445
        %v447 = vrot.slane %v446, 2
        %v448 = vadd.f32 %v446, %v447
        %v449 = vrot.slane %v448, 1
        %v450 = vadd.f32 %v448, %v449
        %v451 = vadd.f32 %v443, %v450
        %452 = vst [vmem:[#allocation2 + $0xd] sm:$0x1] %v451
        %v453 = vsel %vm382, %v268, 0.0
        %v454 = vrot.slane %v453, 4
        %v455 = vadd.f32 %v453, %v454
        %v456 = vrot.slane %v455, 2
        %v457 = vadd.f32 %v455, %v456
        %v458 = vrot.slane %v457, 1
        %v459 = vadd.f32 %v457, %v458
        %v460 = vsub.f32 %v380, %v459
        %v461 = vmul.f32 %v284, %v291
        %vm462 = vcmp.eq.s32.totalorder %v254, 2
        %vm463 = vcmp.gt.f32.partialorder %v270, 0.5
        %v464 = vsel %vm463, %v270, 0.0
        %v465 = vld [vmem:[#allocation2 + $0xe] sm:$0x1]
        %v466 = vsel %vm462, %v461, 0.0
        %v467 = vrot.slane %v466, 4
        %v468 = vadd.f32 %v466, %v467
        %v469 = vrot.slane %v468, 2
        %v470 = vadd.f32 %v468, %v469
        %v471 = vrot.slane %v470, 1
        %v472 = vadd.f32 %v470, %v471
        %v473 = vadd.f32 %v465, %v472
        %474 = vst [vmem:[#allocation2 + $0xe] sm:$0x1] %v473
        %v475 = vld [vmem:[#allocation2 + $0xf] sm:$0x1]
        %v476 = vrot.slane %v461, 4
        %v477 = vadd.f32 %v461, %v476
        %v478 = vrot.slane %v477, 2
        %v479 = vadd.f32 %v477, %v478
        %v480 = vrot.slane %v479, 1
        %v481 = vadd.f32 %v479, %v480
        %v482 = vadd.f32 %v475, %v481
        %483 = vst [vmem:[#allocation2 + $0xf] sm:$0x1] %v482
        %v484 = vld [vmem:[#allocation2 + $0x10] sm:$0x1]
        %v485 = vsel %vm462, 1.0, 0.0
        %v486 = vrot.slane %v485, 4
        %v487 = vadd.f32 %v485, %v486
        %v488 = vrot.slane %v487, 2
        %v489 = vadd.f32 %v487, %v488
        %v490 = vrot.slane %v489, 1
        %v491 = vadd.f32 %v489, %v490
        %v492 = vadd.f32 %v484, %v491
        %493 = vst [vmem:[#allocation2 + $0x10] sm:$0x1] %v492
        %v494 = vld [vmem:[#allocation2 + $0x11] sm:$0x1]
        %v495 = vrot.slane %v464, 4
        %v496 = vadd.f32 %v464, %v495
        %v497 = vrot.slane %v496, 2
        %v498 = vadd.f32 %v496, %v497
        %v499 = vrot.slane %v498, 1
        %v500 = vadd.f32 %v498, %v499
        %v501 = vadd.f32 %v494, %v500
        %502 = vst [vmem:[#allocation2 + $0x11] sm:$0x1] %v501
        %v503 = vld [vmem:[#allocation2 + $0x12] sm:$0x1]
        %v504 = vmul.f32 %v464, %v258
        %v505 = vrot.slane %v504, 4
        %v506 = vadd.f32 %v504, %v505
        %v507 = vrot.slane %v506, 2
        %v508 = vadd.f32 %v506, %v507
        %v509 = vrot.slane %v508, 1
        %v510 = vadd.f32 %v508, %v509
        %v511 = vadd.f32 %v503, %v510
        %512 = vst [vmem:[#allocation2 + $0x12] sm:$0x1] %v511
        %v513 = vld [vmem:[#allocation2 + $0x13] sm:$0x1]
        %v514 = vmul.f32 %v464, %v262
        %v515 = vrot.slane %v514, 4
        %v516 = vadd.f32 %v514, %v515
        %v517 = vrot.slane %v516, 2
        %v518 = vadd.f32 %v516, %v517
        %v519 = vrot.slane %v518, 1
        %v520 = vadd.f32 %v518, %v519
        %v521 = vadd.f32 %v513, %v520
        %522 = vst [vmem:[#allocation2 + $0x13] sm:$0x1] %v521
        %v523 = vld [vmem:[#allocation2 + $0x14] sm:$0x1]
        %v524 = vmul.f32 %v464, %v265
        %v525 = vrot.slane %v524, 4
        %v526 = vadd.f32 %v524, %v525
        %v527 = vrot.slane %v526, 2
        %v528 = vadd.f32 %v526, %v527
        %v529 = vrot.slane %v528, 1
        %v530 = vadd.f32 %v528, %v529
        %v531 = vadd.f32 %v523, %v530
        %532 = vst [vmem:[#allocation2 + $0x14] sm:$0x1] %v531
        %v533 = vsel %vm462, %v270, 0.0
        %v534 = vrot.slane %v533, 4
        %v535 = vadd.f32 %v533, %v534
        %v536 = vrot.slane %v535, 2
        %v537 = vadd.f32 %v535, %v536
        %v538 = vrot.slane %v537, 1
        %v539 = vadd.f32 %v537, %v538
        %v540 = vsub.f32 %v460, %v539
        %v541 = vmul.f32 %v287, %v291
        %vm542 = vcmp.eq.s32.totalorder %v254, 3
        %vm543 = vcmp.gt.f32.partialorder %v272, 0.5
        %v544 = vsel %vm543, %v272, 0.0
        %v545 = vld [vmem:[#allocation2 + $0x15] sm:$0x1]
        %v546 = vsel %vm542, %v541, 0.0
        %v547 = vrot.slane %v546, 4
        %v548 = vadd.f32 %v546, %v547
        %v549 = vrot.slane %v548, 2
        %v550 = vadd.f32 %v548, %v549
        %v551 = vrot.slane %v550, 1
        %v552 = vadd.f32 %v550, %v551
        %v553 = vadd.f32 %v545, %v552
        %554 = vst [vmem:[#allocation2 + $0x15] sm:$0x1] %v553
        %v555 = vld [vmem:[#allocation2 + $0x16] sm:$0x1]
        %v556 = vrot.slane %v541, 4
        %v557 = vadd.f32 %v541, %v556
        %v558 = vrot.slane %v557, 2
        %v559 = vadd.f32 %v557, %v558
        %v560 = vrot.slane %v559, 1
        %v561 = vadd.f32 %v559, %v560
        %v562 = vadd.f32 %v555, %v561
        %563 = vst [vmem:[#allocation2 + $0x16] sm:$0x1] %v562
        %v564 = vld [vmem:[#allocation2 + $0x17] sm:$0x1]
        %v565 = vsel %vm542, 1.0, 0.0
        %v566 = vrot.slane %v565, 4
        %v567 = vadd.f32 %v565, %v566
        %v568 = vrot.slane %v567, 2
        %v569 = vadd.f32 %v567, %v568
        %v570 = vrot.slane %v569, 1
        %v571 = vadd.f32 %v569, %v570
        %v572 = vadd.f32 %v564, %v571
        %573 = vst [vmem:[#allocation2 + $0x17] sm:$0x1] %v572
        %v574 = vld [vmem:[#allocation2 + $0x18] sm:$0x1]
        %v575 = vrot.slane %v544, 4
        %v576 = vadd.f32 %v544, %v575
        %v577 = vrot.slane %v576, 2
        %v578 = vadd.f32 %v576, %v577
        %v579 = vrot.slane %v578, 1
        %v580 = vadd.f32 %v578, %v579
        %v581 = vadd.f32 %v574, %v580
        %582 = vst [vmem:[#allocation2 + $0x18] sm:$0x1] %v581
        %v583 = vld [vmem:[#allocation2 + $0x19] sm:$0x1]
        %v584 = vmul.f32 %v544, %v258
        %v585 = vrot.slane %v584, 4
        %v586 = vadd.f32 %v584, %v585
        %v587 = vrot.slane %v586, 2
        %v588 = vadd.f32 %v586, %v587
        %v589 = vrot.slane %v588, 1
        %v590 = vadd.f32 %v588, %v589
        %v591 = vadd.f32 %v583, %v590
        %592 = vst [vmem:[#allocation2 + $0x19] sm:$0x1] %v591
        %v593 = vld [vmem:[#allocation2 + $0x1a] sm:$0x1]
        %v594 = vmul.f32 %v544, %v262
        %v595 = vrot.slane %v594, 4
        %v596 = vadd.f32 %v594, %v595
        %v597 = vrot.slane %v596, 2
        %v598 = vadd.f32 %v596, %v597
        %v599 = vrot.slane %v598, 1
        %v600 = vadd.f32 %v598, %v599
        %v601 = vadd.f32 %v593, %v600
        %602 = vst [vmem:[#allocation2 + $0x1a] sm:$0x1] %v601
        %v603 = vld [vmem:[#allocation2 + $0x1b] sm:$0x1]
        %v604 = vmul.f32 %v544, %v265
        %v605 = vrot.slane %v604, 4
        %v606 = vadd.f32 %v604, %v605
        %v607 = vrot.slane %v606, 2
        %v608 = vadd.f32 %v606, %v607
        %v609 = vrot.slane %v608, 1
        %v610 = vadd.f32 %v608, %v609
        %v611 = vadd.f32 %v603, %v610
        %612 = vst [vmem:[#allocation2 + $0x1b] sm:$0x1] %v611
        %v613 = vsel %vm542, %v272, 0.0
        %v614 = vrot.slane %v613, 4
        %v615 = vadd.f32 %v613, %v614
        %v616 = vrot.slane %v615, 2
        %v617 = vadd.f32 %v615, %v616
        %v618 = vrot.slane %v617, 1
        %v619 = vadd.f32 %v617, %v618
        %v620 = vsub.f32 %v540, %v619
        %v621 = vld [vmem:[#allocation2 + $0x1c] sm:$0x1]
        %v622 = vadd.f32 %v621, %v620
        %623 = vst [vmem:[#allocation2 + $0x1c] sm:$0x1] %v622
        // Predicated region
        $region41: #{tpu_custom_call.1} parent=27 // pred_check
          %p624 = pneg %p245
        $region42: #{tpu_custom_call.1} parent=27 // pred_check_branch
          %626 = sbr.rel (%p624) target = $region44
        $region43: #{tpu_custom_call.1} parent=27 // pred_region
          %v627 = vld [vmem:[#allocation2] sm:$0xff]
          %v628 = vld [vmem:[#allocation2 + $0x8] sm:$0xff]
          %v629 = vld [vmem:[#allocation2 + $0x10] sm:$0xff]
          %v630 = vld [vmem:[#allocation2 + $0x18] sm:$0x1f]
          %631 = vst [vmem:[%s244] sm:$0xff] %v627
          %632 = vst [vmem:[%s244 + $0x8] sm:$0xff] %v628
          %633 = vst [vmem:[%s244 + $0x10] sm:$0xff] %v629
          %634 = vst [vmem:[%s244 + $0x18] sm:$0x1f] %v630
        $region44: #{tpu_custom_call.1} parent=27 // pred_fallthru
          _
        %p635 = scmp.lt.s32.totalorder %s24, 1
        %s636 = scalar_select %p635, %s24, 1
        %p637 = scmp.lt.s32.totalorder %s25, 1
        %s638 = scalar_select %p637, %s25, 1
        %s639 = smul.addr %s638, 4
        %s640 = smul.addr %s636, 8
        %s641 = sadd.s32 %s639, %s640
        %s642 = smul.addr %s641, 8
        %s643 = scalar_lea.vmem %s2, %s642
        // Predicated region
        $region45: #{tpu_custom_call.1} parent=27 // pred_check
          %p644 = pneg %p118
        $region46: #{tpu_custom_call.1} parent=27 // pred_check_branch
          %646 = sbr.rel (%p644) target = $region48
        $region47: #{tpu_custom_call.1} parent=27 // pred_region
          _
        $region48: #{tpu_custom_call.1} parent=27 // pred_fallthru
          _
      $region28: #{tpu_custom_call.1} parent=5 // pred_fallthru
        _
      %p647 = scmp.le.s32.totalorder 2, %s14
      // Predicated region
      $region49: #{tpu_custom_call.1} parent=5 // pred_check
        %p648 = pneg %p647
      $region50: #{tpu_custom_call.1} parent=5 // pred_check_branch
        %650 = sbr.rel (%p648) target = $region52
      $region51: #{tpu_custom_call.1} parent=5 // pred_region
        %s651 = ssub.s32 %s14, 2
        // Predicated region
        $region53: #{tpu_custom_call.1} parent=51 // pred_check
          %p652 = pneg %p124
        $region54: #{tpu_custom_call.1} parent=51 // pred_check_branch
          %654 = sbr.rel (%p652) target = $region56
        $region55: #{tpu_custom_call.1} parent=51 // pred_region
          %p655 = scmp.lt.s32.totalorder %s27, 1
          %s656 = scalar_select %p655, %s27, 1
          %p657 = scmp.lt.s32.totalorder %s28, 1
          %s658 = scalar_select %p657, %s28, 1
          %s659 = smul.addr %s658, 4
          %s660 = smul.addr %s656, 8
          %s661 = sadd.s32 %s659, %s660
          %s662 = smul.addr %s661, 8
          %s663 = scalar_lea.vmem %s2, %s662
        $region56: #{tpu_custom_call.1} parent=51 // pred_fallthru
          _
      $region52: #{tpu_custom_call.1} parent=5 // pred_fallthru
        _
    $region6: #{tpu_custom_call.1} parent=1 // loop_footer
      %s18 = sadd.s32 1, %s14
    $region7: #{tpu_custom_call.1} parent=1 // loop_footer_branch
      %13 = sbr.rel target = $region3
    $region8: #{tpu_custom_call.1} parent=1 // loop_exit
      _
    %664 = vsyncpa [#allocation4], 1
    %s665 = scalar_lea.sflag [#allocation4], 1
    %666 = vsyncpa %s665, 1
    %667 = vsyncpa [#allocation6], 1
    %s668 = scalar_lea.sflag [#allocation6], 1
    %669 = vsyncpa %s668, 1

</llo_original>
